<compile_context>
chip_gen: v6e
topology: v6e:2x2x1
jax: 0.10.0
libtpu: 0.0.40
codegen_flags: <defaults>
</compile_context>

<pallas_src>
import functools

import jax
import jax.numpy as jnp
from jax.experimental import pallas as pl
from jax.experimental.pallas import tpu as pltpu


def _upsample_conv_kernel(x_ref, w_ref, b_ref, a_ref, o_ref, patches_ref):
    # x_ref:       (1, tile_h+2, W+2, C)  bf16  padded input row-strip (with halo)
    # w_ref:       (9*C, Cout)            bf16  im2col-reshaped conv weights
    # b_ref:       (1, Cout)              f32   conv bias
    # a_ref:       (1, Cout)              f32   PReLU alpha expanded to pre-shuffle channels
    # o_ref:       (1, tile_h*W, Cout)    bf16  conv+bias+PReLU output strip (spatial-major)
    # patches_ref: (tile_h*W, 9*C)        bf16  2-D im2col scratch
    M, _ = patches_ref.shape
    th = x_ref.shape[1] - 2
    W = x_ref.shape[2] - 2
    C = x_ref.shape[3]

    # Build im2col patches: patches[h*W+w, (kh*3+kw)*C + c] = x[h+kh, w+kw, c].
    # Per-tap stores into a 2-D scratch; no whole-buffer reshape afterwards.
    for kh in range(3):
        for kw in range(3):
            k = kh * 3 + kw
            tap = x_ref[0, pl.ds(kh, th), pl.ds(kw, W), :]        # (th, W, C)
            patches_ref[:, k * C:(k + 1) * C] = tap.reshape(M, C)

    # Single deep-K MXU matmul: (M, 9C) @ (9C, Cout), f32 accumulation.
    acc = jnp.dot(patches_ref[...], w_ref[...],
                  preferred_element_type=jnp.float32)             # (M, Cout)

    # Fused bias + PReLU (f32), stored as-is (no result transpose), bf16 out.
    acc = acc + b_ref[...]
    out = jnp.where(acc > 0, acc, a_ref[...] * acc)
    o_ref[0] = out.astype(o_ref.dtype)


@functools.partial(jax.jit, static_argnames=("scale_factor", "tile_h"))
def upsample_block(x_nchw, weight_oihw, bias, prelu_alpha, *, scale_factor,
                   tile_h=None):
    """Forward pass of UpsampleBlock.

    x_nchw:      (N, C, H, W)        float32
    weight_oihw: (C*r^2, C, 3, 3)    float32 (PyTorch OIHW layout)
    bias:        (C*r^2,)            float32
    prelu_alpha: (C,)                float32 (one slope per post-shuffle channel)
    returns:     (N, C, H*r, W*r)    float32
    """
    r = scale_factor
    N, C, H, W = x_nchw.shape
    Cout = C * r * r
    assert weight_oihw.shape == (Cout, C, 3, 3)

    # H-tile heuristic: target matmul M = tile_h*W ~ 2048 rows (amortizes the
    # per-grid-step pipeline overhead and the halo duplication) while keeping
    # tile_h a divisor of H.  Per-step VMEM stays small because only the
    # strip / patches / output-strip scale with tile_h.
    if tile_h is None:
        target = max(1, 2048 // max(W, 1))
        tile_h = 1
        for cand in range(min(H, target), 0, -1):
            if H % cand == 0:
                tile_h = cand
                break
    assert H % tile_h == 0, "tile_h must divide H"
    n_th = H // tile_h

    # NCHW -> NHWC, zero-pad spatial dims by 1 (conv padding=1), cast bf16.
    x_nhwc = jnp.transpose(x_nchw, (0, 2, 3, 1))
    x_pad = jnp.pad(x_nhwc, ((0, 0), (1, 1), (1, 1), (0, 0))).astype(jnp.bfloat16)

    # Overlapping row strips with a 2-row halo (strip t covers padded rows
    # [t*tile_h, t*tile_h + tile_h + 1]).  One small XLA gather over the input
    # (the smallest tensor) buys BlockSpec-pipelined, O(strip)-sized VMEM use.
    row_idx = (jnp.arange(n_th)[:, None] * tile_h
               + jnp.arange(tile_h + 2)[None, :])                 # (n_th, tile_h+2)
    x_strips = jnp.take(x_pad, row_idx, axis=1)                   # (N, n_th, th+2, W+2, C)
    x_strips = x_strips.reshape(N * n_th, tile_h + 2, W + 2, C)

    # Weights OIHW -> (kh, kw, cin, cout) -> (9*C, Cout), bf16 for the MXU.
    w2 = jnp.transpose(weight_oihw, (2, 3, 1, 0)).reshape(9 * C, Cout)
    w2 = w2.astype(jnp.bfloat16)
    b2 = bias.reshape(1, Cout).astype(jnp.float32)

    # Expand PReLU alpha from post-shuffle channel c to pre-shuffle channel
    # c*r^2 + i*r + j (PixelShuffle mapping) so it can be fused pre-shuffle.
    alpha2 = jnp.repeat(prelu_alpha, r * r).reshape(1, Cout).astype(jnp.float32)

    conv_out = pl.pallas_call(
        _upsample_conv_kernel,
        out_shape=jax.ShapeDtypeStruct((N * n_th, tile_h * W, Cout), jnp.bfloat16),
        grid_spec=pltpu.PrefetchScalarGridSpec(
            num_scalar_prefetch=0,
            grid=(N * n_th,),
            in_specs=[
                # One halo-ed row strip per grid step (auto double-buffered).
                pl.BlockSpec((1, tile_h + 2, W + 2, C), lambda s: (s, 0, 0, 0)),
                # Grid-invariant weights / bias / alpha.
                pl.BlockSpec((9 * C, Cout), lambda s: (0, 0)),
                pl.BlockSpec((1, Cout), lambda s: (0, 0)),
                pl.BlockSpec((1, Cout), lambda s: (0, 0)),
            ],
            # Spatial-major output strip, stored straight from the MXU result.
            out_specs=pl.BlockSpec((1, tile_h * W, Cout), lambda s: (s, 0, 0)),
            scratch_shapes=[pltpu.VMEM((tile_h * W, 9 * C), jnp.bfloat16)],
        ),
        compiler_params=pltpu.CompilerParams(
            dimension_semantics=("parallel",),
            vmem_limit_bytes=48 * 1024 * 1024),
    )(x_strips, w2, b2, alpha2)

    # conv_out[s, h_local*W + w, c*r^2 + i*r + j] with s = n*n_th + t and
    # h = t*tile_h + h_local, so a plain reshape recovers (N, H, W, C, r, r);
    # the PixelShuffle permutation is one fused XLA transpose (f32 final out).
    y = conv_out.astype(jnp.float32).reshape(N, H, W, C, r, r)
    y = jnp.transpose(y, (0, 3, 1, 4, 2, 5))
    return y.reshape(N, C, H * r, W * r)


def _reference(x_nchw, weight_oihw, bias, prelu_alpha, scale_factor):
    """Pure-JAX f32 reference (conv -> pixel shuffle -> PReLU)."""
    r = scale_factor
    N, C, H, W = x_nchw.shape
    conv = jax.lax.conv_general_dilated(
        x_nchw, weight_oihw, window_strides=(1, 1), padding=((1, 1), (1, 1)),
        dimension_numbers=("NCHW", "OIHW", "NCHW"))
    conv = conv + bias[None, :, None, None]
    y = conv.reshape(N, C, r, r, H, W)
    y = jnp.transpose(y, (0, 1, 4, 2, 5, 3)).reshape(N, C, H * r, W * r)
    alpha = prelu_alpha[None, :, None, None]
    return jnp.where(y > 0, y, alpha * y)


if __name__ == "__main__":
    in_channels = 4
    scale_factor = 2
    N, H, W = 2, 16, 16
    c_out = in_channels * scale_factor ** 2

    key = jax.random.PRNGKey(0)
    kx, kw, kb = jax.random.split(key, 3)
    x = jax.random.normal(kx, (N, in_channels, H, W), dtype=jnp.float32)
    weight = 0.1 * jax.random.normal(kw, (c_out, in_channels, 3, 3),
                                     dtype=jnp.float32)
    bias = 0.1 * jax.random.normal(kb, (c_out,), dtype=jnp.float32)
    # PyTorch PReLU default init: 0.25 for every channel.
    prelu_alpha = jnp.full((in_channels,), 0.25, dtype=jnp.float32)

    # tile_h=8 -> 2 strips per image, grid (4,): exercises the halo-strip path.
    out = upsample_block(x, weight, bias, prelu_alpha,
                         scale_factor=scale_factor, tile_h=8)
    jax.block_until_ready(out)

    ref = _reference(x, weight, bias, prelu_alpha, scale_factor)
    assert out.shape == (N, in_channels, H * scale_factor, W * scale_factor)
    max_err = float(jnp.max(jnp.abs(out - ref)))
    # bf16 activations/weights/intermediate with f32 accumulation -> relaxed tol.
    assert jnp.allclose(out, ref, atol=3e-2, rtol=3e-2), (
        f"mismatch vs reference (max abs err {max_err})")

    print("KERNEL_OK")
</pallas_src>

<mosaic_0001>
module attributes {stable_mosaic.version = 11 : i64} {
  func.func @_upsample_conv_kernel(%arg0: i32, %arg1: memref<1x10x18x4xbf16, #tpu.memory_space<vmem>>, %arg2: memref<36x16xbf16, #tpu.memory_space<vmem>>, %arg3: memref<1x16xf32, #tpu.memory_space<vmem>>, %arg4: memref<1x16xf32, #tpu.memory_space<vmem>>, %arg5: memref<1x128x16xbf16, #tpu.memory_space<vmem>>, %arg6: memref<128x36xbf16, #tpu.memory_space<vmem>>) attributes {dimension_semantics = [#tpu.dimension_semantics<parallel>], iteration_bounds = array<i64: 4>, scalar_prefetch = 0 : i64, scratch_operands = 1 : i64, tpu.core_type = #tpu.core_type<tc>, window_params = [{transform_indices = @transform_0, window_bounds = array<i64: 1, 10, 18, 4>}, {pipeline_mode = #tpu.pipeline_mode<synchronous>, transform_indices = @transform_1, window_bounds = array<i64: 36, 16>}, {pipeline_mode = #tpu.pipeline_mode<synchronous>, transform_indices = @transform_2, window_bounds = array<i64: 1, 16>}, {pipeline_mode = #tpu.pipeline_mode<synchronous>, transform_indices = @transform_3, window_bounds = array<i64: 1, 16>}, {transform_indices = @transform_4, window_bounds = array<i64: 1, 128, 16>}]} {
    %c0 = arith.constant 0 : index
    %c0_0 = arith.constant 0 : index
    %c0_1 = arith.constant 0 : index
    %c0_2 = arith.constant 0 : index
    %0 = vector.load %arg1[%c0, %c0_0, %c0_1, %c0_2] : memref<1x10x18x4xbf16, #tpu.memory_space<vmem>>, vector<1x8x16x4xbf16>
    %1 = vector.shape_cast %0 : vector<1x8x16x4xbf16> to vector<8x16x4xbf16>
    %2 = vector.shape_cast %1 : vector<8x16x4xbf16> to vector<128x4xbf16>
    %c0_3 = arith.constant 0 : index
    %c0_4 = arith.constant 0 : index
    %3 = vector.load %arg6[%c0_3, %c0_4] : memref<128x36xbf16, #tpu.memory_space<vmem>>, vector<128x4xbf16>
    tpu.vector_store %arg6[%c0_3, %c0_4], %2 {strides = array<i32>} : memref<128x36xbf16, #tpu.memory_space<vmem>>, vector<128x4xbf16>,
    %c0_5 = arith.constant 0 : index
    %c0_6 = arith.constant 0 : index
    %c1 = arith.constant 1 : index
    %c0_7 = arith.constant 0 : index
    %4 = vector.load %arg1[%c0_5, %c0_6, %c1, %c0_7] : memref<1x10x18x4xbf16, #tpu.memory_space<vmem>>, vector<1x8x16x4xbf16>
    %5 = vector.shape_cast %4 : vector<1x8x16x4xbf16> to vector<8x16x4xbf16>
    %6 = vector.shape_cast %5 : vector<8x16x4xbf16> to vector<128x4xbf16>
    %c0_8 = arith.constant 0 : index
    %c4 = arith.constant 4 : index
    %7 = vector.load %arg6[%c0_8, %c4] : memref<128x36xbf16, #tpu.memory_space<vmem>>, vector<128x4xbf16>
    tpu.vector_store %arg6[%c0_8, %c4], %6 {strides = array<i32>} : memref<128x36xbf16, #tpu.memory_space<vmem>>, vector<128x4xbf16>,
    %c0_9 = arith.constant 0 : index
    %c0_10 = arith.constant 0 : index
    %c2 = arith.constant 2 : index
    %c0_11 = arith.constant 0 : index
    %8 = vector.load %arg1[%c0_9, %c0_10, %c2, %c0_11] : memref<1x10x18x4xbf16, #tpu.memory_space<vmem>>, vector<1x8x16x4xbf16>
    %9 = vector.shape_cast %8 : vector<1x8x16x4xbf16> to vector<8x16x4xbf16>
    %10 = vector.shape_cast %9 : vector<8x16x4xbf16> to vector<128x4xbf16>
    %c0_12 = arith.constant 0 : index
    %c8 = arith.constant 8 : index
    %11 = vector.load %arg6[%c0_12, %c8] : memref<128x36xbf16, #tpu.memory_space<vmem>>, vector<128x4xbf16>
    tpu.vector_store %arg6[%c0_12, %c8], %10 {strides = array<i32>} : memref<128x36xbf16, #tpu.memory_space<vmem>>, vector<128x4xbf16>,
    %c0_13 = arith.constant 0 : index
    %c1_14 = arith.constant 1 : index
    %c0_15 = arith.constant 0 : index
    %c0_16 = arith.constant 0 : index
    %12 = vector.load %arg1[%c0_13, %c1_14, %c0_15, %c0_16] : memref<1x10x18x4xbf16, #tpu.memory_space<vmem>>, vector<1x8x16x4xbf16>
    %13 = vector.shape_cast %12 : vector<1x8x16x4xbf16> to vector<8x16x4xbf16>
    %14 = vector.shape_cast %13 : vector<8x16x4xbf16> to vector<128x4xbf16>
    %c0_17 = arith.constant 0 : index
    %c12 = arith.constant 12 : index
    %15 = vector.load %arg6[%c0_17, %c12] : memref<128x36xbf16, #tpu.memory_space<vmem>>, vector<128x4xbf16>
    tpu.vector_store %arg6[%c0_17, %c12], %14 {strides = array<i32>} : memref<128x36xbf16, #tpu.memory_space<vmem>>, vector<128x4xbf16>,
    %c0_18 = arith.constant 0 : index
    %c1_19 = arith.constant 1 : index
    %c1_20 = arith.constant 1 : index
    %c0_21 = arith.constant 0 : index
    %16 = vector.load %arg1[%c0_18, %c1_19, %c1_20, %c0_21] : memref<1x10x18x4xbf16, #tpu.memory_space<vmem>>, vector<1x8x16x4xbf16>
    %17 = vector.shape_cast %16 : vector<1x8x16x4xbf16> to vector<8x16x4xbf16>
    %18 = vector.shape_cast %17 : vector<8x16x4xbf16> to vector<128x4xbf16>
    %c0_22 = arith.constant 0 : index
    %c16 = arith.constant 16 : index
    %19 = vector.load %arg6[%c0_22, %c16] : memref<128x36xbf16, #tpu.memory_space<vmem>>, vector<128x4xbf16>
    tpu.vector_store %arg6[%c0_22, %c16], %18 {strides = array<i32>} : memref<128x36xbf16, #tpu.memory_space<vmem>>, vector<128x4xbf16>,
    %c0_23 = arith.constant 0 : index
    %c1_24 = arith.constant 1 : index
    %c2_25 = arith.constant 2 : index
    %c0_26 = arith.constant 0 : index
    %20 = vector.load %arg1[%c0_23, %c1_24, %c2_25, %c0_26] : memref<1x10x18x4xbf16, #tpu.memory_space<vmem>>, vector<1x8x16x4xbf16>
    %21 = vector.shape_cast %20 : vector<1x8x16x4xbf16> to vector<8x16x4xbf16>
    %22 = vector.shape_cast %21 : vector<8x16x4xbf16> to vector<128x4xbf16>
    %c0_27 = arith.constant 0 : index
    %c20 = arith.constant 20 : index
    %23 = vector.load %arg6[%c0_27, %c20] : memref<128x36xbf16, #tpu.memory_space<vmem>>, vector<128x4xbf16>
    tpu.vector_store %arg6[%c0_27, %c20], %22 {strides = array<i32>} : memref<128x36xbf16, #tpu.memory_space<vmem>>, vector<128x4xbf16>,
    %c0_28 = arith.constant 0 : index
    %c2_29 = arith.constant 2 : index
    %c0_30 = arith.constant 0 : index
    %c0_31 = arith.constant 0 : index
    %24 = vector.load %arg1[%c0_28, %c2_29, %c0_30, %c0_31] : memref<1x10x18x4xbf16, #tpu.memory_space<vmem>>, vector<1x8x16x4xbf16>
    %25 = vector.shape_cast %24 : vector<1x8x16x4xbf16> to vector<8x16x4xbf16>
    %26 = vector.shape_cast %25 : vector<8x16x4xbf16> to vector<128x4xbf16>
    %c0_32 = arith.constant 0 : index
    %c24 = arith.constant 24 : index
    %27 = vector.load %arg6[%c0_32, %c24] : memref<128x36xbf16, #tpu.memory_space<vmem>>, vector<128x4xbf16>
    tpu.vector_store %arg6[%c0_32, %c24], %26 {strides = array<i32>} : memref<128x36xbf16, #tpu.memory_space<vmem>>, vector<128x4xbf16>,
    %c0_33 = arith.constant 0 : index
    %c2_34 = arith.constant 2 : index
    %c1_35 = arith.constant 1 : index
    %c0_36 = arith.constant 0 : index
    %28 = vector.load %arg1[%c0_33, %c2_34, %c1_35, %c0_36] : memref<1x10x18x4xbf16, #tpu.memory_space<vmem>>, vector<1x8x16x4xbf16>
    %29 = vector.shape_cast %28 : vector<1x8x16x4xbf16> to vector<8x16x4xbf16>
    %30 = vector.shape_cast %29 : vector<8x16x4xbf16> to vector<128x4xbf16>
    %c0_37 = arith.constant 0 : index
    %c28 = arith.constant 28 : index
    %31 = vector.load %arg6[%c0_37, %c28] : memref<128x36xbf16, #tpu.memory_space<vmem>>, vector<128x4xbf16>
    tpu.vector_store %arg6[%c0_37, %c28], %30 {strides = array<i32>} : memref<128x36xbf16, #tpu.memory_space<vmem>>, vector<128x4xbf16>,
    %c0_38 = arith.constant 0 : index
    %c2_39 = arith.constant 2 : index
    %c2_40 = arith.constant 2 : index
    %c0_41 = arith.constant 0 : index
    %32 = vector.load %arg1[%c0_38, %c2_39, %c2_40, %c0_41] : memref<1x10x18x4xbf16, #tpu.memory_space<vmem>>, vector<1x8x16x4xbf16>
    %33 = vector.shape_cast %32 : vector<1x8x16x4xbf16> to vector<8x16x4xbf16>
    %34 = vector.shape_cast %33 : vector<8x16x4xbf16> to vector<128x4xbf16>
    %c0_42 = arith.constant 0 : index
    %c32 = arith.constant 32 : index
    %35 = vector.load %arg6[%c0_42, %c32] : memref<128x36xbf16, #tpu.memory_space<vmem>>, vector<128x4xbf16>
    tpu.vector_store %arg6[%c0_42, %c32], %34 {strides = array<i32>} : memref<128x36xbf16, #tpu.memory_space<vmem>>, vector<128x4xbf16>,
    %c0_43 = arith.constant 0 : index
    %c0_44 = arith.constant 0 : index
    %36 = vector.load %arg6[%c0_43, %c0_44] : memref<128x36xbf16, #tpu.memory_space<vmem>>, vector<128x36xbf16>
    %c0_45 = arith.constant 0 : index
    %c0_46 = arith.constant 0 : index
    %37 = vector.load %arg2[%c0_45, %c0_46] : memref<36x16xbf16, #tpu.memory_space<vmem>>, vector<36x16xbf16>
    %cst = arith.constant dense<0.000000e+00> : vector<128x16xf32>
    %38 = tpu.matmul %36, %37, %cst {dimension_numbers = #tpu.dot_dimension_numbers<[1], [0], [0], [1], [0, 0, 1, 1], [], []>} : vector<128x36xbf16>, vector<36x16xbf16>, vector<128x16xf32> -> vector<128x16xf32>
    %c0_47 = arith.constant 0 : index
    %c0_48 = arith.constant 0 : index
    %39 = vector.load %arg3[%c0_47, %c0_48] : memref<1x16xf32, #tpu.memory_space<vmem>>, vector<1x16xf32>
    %40 = vector.broadcast %39 : vector<1x16xf32> to vector<128x16xf32>
    %41 = arith.addf %38, %40 : vector<128x16xf32>
    %cst_49 = arith.constant 0.000000e+00 : f32
    %42 = vector.broadcast %cst_49 : f32 to vector<128x16xf32>
    %43 = arith.cmpf ogt, %41, %42 : vector<128x16xf32>
    %c0_50 = arith.constant 0 : index
    %c0_51 = arith.constant 0 : index
    %44 = vector.load %arg4[%c0_50, %c0_51] : memref<1x16xf32, #tpu.memory_space<vmem>>, vector<1x16xf32>
    %45 = vector.broadcast %44 : vector<1x16xf32> to vector<128x16xf32>
    %46 = arith.mulf %45, %41 : vector<128x16xf32>
    %47 = arith.select %43, %41, %46 : vector<128x16xi1>, vector<128x16xf32>
    %48 = arith.truncf %47 : vector<128x16xf32> to vector<128x16xbf16>
    %c0_52 = arith.constant 0 : index
    %c0_53 = arith.constant 0 : index
    %c0_54 = arith.constant 0 : index
    %49 = vector.load %arg5[%c0_52, %c0_53, %c0_54] : memref<1x128x16xbf16, #tpu.memory_space<vmem>>, vector<1x128x16xbf16>
    %50 = vector.shape_cast %49 : vector<1x128x16xbf16> to vector<128x16xbf16>
    %51 = vector.shape_cast %48 : vector<128x16xbf16> to vector<1x128x16xbf16>
    tpu.vector_store %arg5[%c0_52, %c0_53, %c0_54], %51 {strides = array<i32>} : memref<1x128x16xbf16, #tpu.memory_space<vmem>>, vector<1x128x16xbf16>,
    return
  }
  func.func @transform_0(%arg0: i32) -> (i32, i32, i32, i32) {
    %c0_i32 = arith.constant 0 : i32
    %c0_i32_0 = arith.constant 0 : i32
    %c0_i32_1 = arith.constant 0 : i32
    %c0_i32_2 = arith.constant 0 : i32
    return %arg0, %c0_i32, %c0_i32_0, %c0_i32_1 : i32, i32, i32, i32
  }
  func.func @transform_1(%arg0: i32) -> (i32, i32) {
    %c0_i32 = arith.constant 0 : i32
    %c0_i32_0 = arith.constant 0 : i32
    %c0_i32_1 = arith.constant 0 : i32
    return %c0_i32, %c0_i32_0 : i32, i32
  }
  func.func @transform_2(%arg0: i32) -> (i32, i32) {
    %c0_i32 = arith.constant 0 : i32
    %c0_i32_0 = arith.constant 0 : i32
    %c0_i32_1 = arith.constant 0 : i32
    return %c0_i32, %c0_i32_0 : i32, i32
  }
  func.func @transform_3(%arg0: i32) -> (i32, i32) {
    %c0_i32 = arith.constant 0 : i32
    %c0_i32_0 = arith.constant 0 : i32
    %c0_i32_1 = arith.constant 0 : i32
    return %c0_i32, %c0_i32_0 : i32, i32
  }
  func.func @transform_4(%arg0: i32) -> (i32, i32, i32) {
    %c0_i32 = arith.constant 0 : i32
    %c0_i32_0 = arith.constant 0 : i32
    %c0_i32_1 = arith.constant 0 : i32
    return %arg0, %c0_i32, %c0_i32_0 : i32, i32, i32
  }
}

</mosaic_0001>

<llo_original>
// kernel: upsample_block.1
$region0: #{upsample_block.1}
  #allocation0 [shape = 'u32[]', space=smem, size = 0x4, offset = 0x4, fixed_abs, tag = 'smem constant byte address 0x4 - core index']
  #allocation1 [shape = 'u32[144,128]{1,0:T(1,128)}', space=vmem, size = 0x12000, scoped, tag = 'internal scratch']
  #allocation2 [shape = 'bf16[128,36]{1,0:T(8,128)(2,1)}', space=vmem, size = 0x8000, scoped, tag = 'scratch operand']
  %s0 = inlined_call_operand.vmem [shape: bf16[4,10,18,4], index: 0, kind: input, shape index: {}]
  %s1 = inlined_call_operand.vmem [shape: bf16[36,16], index: 1, kind: input, shape index: {}]
  %s2 = inlined_call_operand.vmem [shape: f32[1,16], index: 2, kind: input, shape index: {}]
  %s3 = inlined_call_operand.vmem [shape: f32[1,16], index: 3, kind: input, shape index: {}]
  %s4 = inlined_call_operand.vmem [shape: bf16[4,128,16], index: 4, kind: output, shape index: {}]
  %s5 = sld [smem:[#allocation0]]
  $region49: #{upsample_block.1} parent=0
    _
  %s7 = ssub.s32 1, %s5
  %s8 = scalar_select 0, %s7, %s5
  loop: start=0, step=1, limit=6
  $region2: #{upsample_block.1} parent=0 // loop_pre_header
    _
  $region3: #{upsample_block.1} parent=0 // loop_header
    %s10 = sphi 0, %s14
    %p11 = scmp.ge.s32.totalorder %s10, 6
    %s20 = sphi 0, %s22
    %s23 = sphi 0, %s20
    %s24 = sphi 0, %s23
    %s40 = sphi 0, %s24
    %s44 = sphi 0, %s44
    %s46 = sphi 0, %s44
    %s47 = sphi 0, %s46
    %s61 = sphi 0, %s47
    %s65 = sphi 0, %s65
    %s67 = sphi 0, %s65
    %s68 = sphi 0, %s67
    %s82 = sphi 0, %s68
    %s86 = sphi 0, %s86
    %s88 = sphi 0, %s86
    %s89 = sphi 0, %s88
    %s103 = sphi 0, %s89
    %s109 = sphi 0, %s111
    %s112 = sphi 0, %s109
    %s113 = sphi 0, %s112
    %s129 = sphi 0, %s113
  $region4: #{upsample_block.1} parent=0 // loop_header_branch
    %13 = sbr.rel (%p11) target = $region8
  $region5: #{upsample_block.1} parent=0 // loop_body
    %s15 = ssub.s32 %s10, 1
    %s16 = ssub.s32 %s10, 2
    %s17 = sadd.s32 %s10, 1
    %s18 = ssub.s32 %s10, %s17
    %p19 = scmp.eq.s32.totalorder %s18, 0
    %s21 = sadd.s32 %s20, 1
    %s22 = scalar_select %p19, %s20, %s21
    %p25 = pneg %p19
    %p26 = scmp.eq.s32.totalorder %s10, 3
    %p27 = por %p25, %p26
    %p28 = scmp.ne.s32.totalorder %s20, %s23
    %p29 = scmp.eq.s32.totalorder %s10, 0
    %p30 = por %p28, %p29
    %p31 = scmp.ne.s32.totalorder %s20, %s23
    %p32 = scmp.eq.s32.totalorder %s15, 3
    %p33 = por %p31, %p32
    %p34 = scmp.ne.s32.totalorder %s23, %s24
    %p35 = scmp.eq.s32.totalorder %s15, 0
    %p36 = por %p34, %p35
    %p37 = scmp.ne.s32.totalorder %s23, %s24
    %p38 = scmp.eq.s32.totalorder %s16, 3
    %p39 = por %p37, %p38
    %p41 = scmp.ne.s32.totalorder %s24, %s40
    %p42 = scmp.eq.s32.totalorder %s16, 0
    %p43 = por %p41, %p42
    %s45 = sadd.s32 %s44, 1
    %p48 = scmp.eq.s32.totalorder %s10, 3
    %p49 = scmp.ne.s32.totalorder %s44, %s46
    %p50 = scmp.eq.s32.totalorder %s10, 0
    %p51 = por %p49, %p50
    %p52 = scmp.ne.s32.totalorder %s44, %s46
    %p53 = scmp.eq.s32.totalorder %s15, 3
    %p54 = por %p52, %p53
    %p55 = scmp.ne.s32.totalorder %s46, %s47
    %p56 = scmp.eq.s32.totalorder %s15, 0
    %p57 = por %p55, %p56
    %p58 = scmp.ne.s32.totalorder %s46, %s47
    %p59 = scmp.eq.s32.totalorder %s16, 3
    %p60 = por %p58, %p59
    %p62 = scmp.ne.s32.totalorder %s47, %s61
    %p63 = scmp.eq.s32.totalorder %s16, 0
    %p64 = por %p62, %p63
    %s66 = sadd.s32 %s65, 1
    %p69 = scmp.eq.s32.totalorder %s10, 3
    %p70 = scmp.ne.s32.totalorder %s65, %s67
    %p71 = scmp.eq.s32.totalorder %s10, 0
    %p72 = por %p70, %p71
    %p73 = scmp.ne.s32.totalorder %s65, %s67
    %p74 = scmp.eq.s32.totalorder %s15, 3
    %p75 = por %p73, %p74
    %p76 = scmp.ne.s32.totalorder %s67, %s68
    %p77 = scmp.eq.s32.totalorder %s15, 0
    %p78 = por %p76, %p77
    %p79 = scmp.ne.s32.totalorder %s67, %s68
    %p80 = scmp.eq.s32.totalorder %s16, 3
    %p81 = por %p79, %p80
    %p83 = scmp.ne.s32.totalorder %s68, %s82
    %p84 = scmp.eq.s32.totalorder %s16, 0
    %p85 = por %p83, %p84
    %s87 = sadd.s32 %s86, 1
    %p90 = scmp.eq.s32.totalorder %s10, 3
    %p91 = scmp.ne.s32.totalorder %s86, %s88
    %p92 = scmp.eq.s32.totalorder %s10, 0
    %p93 = por %p91, %p92
    %p94 = scmp.ne.s32.totalorder %s86, %s88
    %p95 = scmp.eq.s32.totalorder %s15, 3
    %p96 = por %p94, %p95
    %p97 = scmp.ne.s32.totalorder %s88, %s89
    %p98 = scmp.eq.s32.totalorder %s15, 0
    %p99 = por %p97, %p98
    %p100 = scmp.ne.s32.totalorder %s88, %s89
    %p101 = scmp.eq.s32.totalorder %s16, 3
    %p102 = por %p100, %p101
    %p104 = scmp.ne.s32.totalorder %s89, %s103
    %p105 = scmp.eq.s32.totalorder %s16, 0
    %p106 = por %p104, %p105
    %s107 = ssub.s32 %s10, %s17
    %p108 = scmp.eq.s32.totalorder %s107, 0
    %s110 = sadd.s32 %s109, 1
    %s111 = scalar_select %p108, %s109, %s110
    %p114 = pneg %p108
    %p115 = scmp.eq.s32.totalorder %s10, 3
    %p116 = por %p114, %p115
    %p117 = scmp.ne.s32.totalorder %s109, %s112
    %p118 = scmp.eq.s32.totalorder %s10, 0
    %p119 = por %p117, %p118
    %p120 = scmp.ne.s32.totalorder %s109, %s112
    %p121 = scmp.eq.s32.totalorder %s15, 3
    %p122 = por %p120, %p121
    %p123 = scmp.ne.s32.totalorder %s112, %s113
    %p124 = scmp.eq.s32.totalorder %s15, 0
    %p125 = por %p123, %p124
    %p126 = scmp.ne.s32.totalorder %s112, %s113
    %p127 = scmp.eq.s32.totalorder %s16, 3
    %p128 = por %p126, %p127
    %p130 = scmp.ne.s32.totalorder %s113, %s129
    %p131 = scmp.eq.s32.totalorder %s16, 0
    %p132 = por %p130, %p131
    %p133 = scmp.le.s32.totalorder 1, %s10
    %p134 = scmp.lt.s32.totalorder %s10, 5
    %p135 = pnand %p133, %p134
    %p136 = pneg %p135
    // Predicated region
    $region9: #{upsample_block.1} parent=5 // pred_check
      _
    $region10: #{upsample_block.1} parent=5 // pred_check_branch
      %138 = sbr.rel (%p135) target = $region12
    $region11: #{upsample_block.1} parent=5 // pred_region
      %s139 = ssub.s32 %s10, 1
      // Predicated region
      $region13: #{upsample_block.1} parent=11 // pred_check
        %p140 = pneg %p57
      $region14: #{upsample_block.1} parent=11 // pred_check_branch
        %142 = sbr.rel (%p140) target = $region16
      $region15: #{upsample_block.1} parent=11 // pred_region
        _
      $region16: #{upsample_block.1} parent=11 // pred_fallthru
        _
      // Predicated region
      $region17: #{upsample_block.1} parent=11 // pred_check
        %p143 = pneg %p78
      $region18: #{upsample_block.1} parent=11 // pred_check_branch
        %145 = sbr.rel (%p143) target = $region20
      $region19: #{upsample_block.1} parent=11 // pred_region
        _
      $region20: #{upsample_block.1} parent=11 // pred_fallthru
        _
      // Predicated region
      $region21: #{upsample_block.1} parent=11 // pred_check
        %p146 = pneg %p99
      $region22: #{upsample_block.1} parent=11 // pred_check_branch
        %148 = sbr.rel (%p146) target = $region24
      $region23: #{upsample_block.1} parent=11 // pred_region
        _
      $region24: #{upsample_block.1} parent=11 // pred_fallthru
        _
    $region12: #{upsample_block.1} parent=5 // pred_fallthru
      _
    %p149 = scmp.lt.s32.totalorder %s10, 4
    // Predicated region
    $region25: #{upsample_block.1} parent=5 // pred_check
      %p150 = pneg %p149
    $region26: #{upsample_block.1} parent=5 // pred_check_branch
      %152 = sbr.rel (%p150) target = $region28
    $region27: #{upsample_block.1} parent=5 // pred_region
      // Predicated region
      $region29: #{upsample_block.1} parent=27 // pred_check
        %p153 = pneg %p30
      $region30: #{upsample_block.1} parent=27 // pred_check_branch
        %155 = sbr.rel (%p153) target = $region32
      $region31: #{upsample_block.1} parent=27 // pred_region
        %p156 = scmp.lt.s32.totalorder %s10, 3
        %s157 = scalar_select %p156, %s10, 3
        %s158 = smul.addr %s157, 30
        %s159 = smul.addr %s158, 4
        %s160 = scalar_lea.vmem %s0, %s159
      $region32: #{upsample_block.1} parent=27 // pred_fallthru
        _
    $region28: #{upsample_block.1} parent=5 // pred_fallthru
      _
    %p161 = scmp.le.s32.totalorder 1, %s10
    %p162 = scmp.lt.s32.totalorder %s10, 5
    %p163 = pnand %p161, %p162
    %p164 = pneg %p163
    // Predicated region
    $region33: #{upsample_block.1} parent=5 // pred_check
      _
    $region34: #{upsample_block.1} parent=5 // pred_check_branch
      %166 = sbr.rel (%p163) target = $region36
    $region35: #{upsample_block.1} parent=5 // pred_region
      %s167 = ssub.s32 %s10, 1
      %p168 = scmp.lt.s32.totalorder %s15, 3
      %s169 = scalar_select %p168, %s15, 3
      %s170 = smul.addr %s169, 30
      %s171 = smul.addr %s170, 4
      %s172 = scalar_lea.vmem %s0, %s171
      %p173 = pneg %p36
      %p174 = pneg %p33
      %p175 = pneg %p57
      %p176 = pneg %p54
      %p177 = pneg %p78
      %p178 = pneg %p75
      %p179 = pneg %p99
      %p180 = pneg %p96
      %p181 = pneg %p125
      %p182 = pneg %p122
      %p183 = scmp.lt.s32.totalorder %s15, 3
      %s184 = scalar_select %p183, %s15, 3
      %s185 = smul.addr %s184, 16
      %s186 = smul.addr %s185, 4
      %s187 = scalar_lea.vmem %s4, %s186
      %p188 = scmp.lt.s32.totalorder %s15, 3
      %s189 = scalar_select %p188, %s15, 3
      %s190 = smul.addr %s189, 30
      %s191 = smul.addr %s190, 4
      %s192 = scalar_lea.vmem %s0, %s191
      %p193 = scmp.lt.s32.totalorder %s15, 3
      %s194 = scalar_select %p193, %s15, 3
      %s195 = smul.addr %s194, 16
      %s196 = smul.addr %s195, 4
      %s197 = scalar_lea.vmem %s4, %s196
      %v199 = vld [vmem:[%s192] sm:$0xf]
      %v200 = vld [vmem:[%s192 + $0x4] sm:$0xf]
      %v201 = vld [vmem:[%s192 + $0xc] sm:$0xf]
      %v202 = vld [vmem:[%s192 + $0x10] sm:$0xf]
      %v203 = vld [vmem:[%s192 + $0x18] sm:$0xf]
      %v204 = vld [vmem:[%s192 + $0x1c] sm:$0xf]
      %v205 = vld [vmem:[%s192 + $0x24] sm:$0xf]
      %v206 = vld [vmem:[%s192 + $0x28] sm:$0xf]
      %v207 = vld [vmem:[%s192 + $0x30] sm:$0xf]
      %v208 = vld [vmem:[%s192 + $0x34] sm:$0xf]
      %v209 = vld [vmem:[%s192 + $0x3c] sm:$0xf]
      %v210 = vld [vmem:[%s192 + $0x40] sm:$0xf]
      %v211 = vld [vmem:[%s192 + $0x48] sm:$0xf]
      %v212 = vld [vmem:[%s192 + $0x4c] sm:$0xf]
      %v213 = vld [vmem:[%s192 + $0x54] sm:$0xf]
      %v214 = vld [vmem:[%s192 + $0x58] sm:$0xf]
      %vm215 = vcmask 27648
      %216 = vst.msk [vmem:[#allocation2] sm:$0xf] %vm215, %v199
      %217 = vst.msk [vmem:[#allocation2 + $0x4] sm:$0xf] %vm215, %v200
      %218 = vst.msk [vmem:[#allocation2 + $0x8] sm:$0xf] %vm215, %v201
      %219 = vst.msk [vmem:[#allocation2 + $0xc] sm:$0xf] %vm215, %v202
      %220 = vst.msk [vmem:[#allocation2 + $0x10] sm:$0xf] %vm215, %v203
      %221 = vst.msk [vmem:[#allocation2 + $0x14] sm:$0xf] %vm215, %v204
      %222 = vst.msk [vmem:[#allocation2 + $0x18] sm:$0xf] %vm215, %v205
      %223 = vst.msk [vmem:[#allocation2 + $0x1c] sm:$0xf] %vm215, %v206
      %224 = vst.msk [vmem:[#allocation2 + $0x20] sm:$0xf] %vm215, %v207
      %225 = vst.msk [vmem:[#allocation2 + $0x24] sm:$0xf] %vm215, %v208
      %226 = vst.msk [vmem:[#allocation2 + $0x28] sm:$0xf] %vm215, %v209
      %227 = vst.msk [vmem:[#allocation2 + $0x2c] sm:$0xf] %vm215, %v210
      %228 = vst.msk [vmem:[#allocation2 + $0x30] sm:$0xf] %vm215, %v211
      %229 = vst.msk [vmem:[#allocation2 + $0x34] sm:$0xf] %vm215, %v212
      %230 = vst.msk [vmem:[#allocation2 + $0x38] sm:$0xf] %vm215, %v213
      %231 = vst.msk [vmem:[#allocation2 + $0x3c] sm:$0xf] %vm215, %v214
      %v232 = vld [vmem:[%s192] sm:$0xf]
      %v233 = vld [vmem:[%s192 + $0x4] sm:$0xf]
      %v234 = vld [vmem:[%s192 + $0x8] sm:$0x1]
      %v235 = vld [vmem:[%s192 + $0xc] sm:$0xf]
      %v236 = vld [vmem:[%s192 + $0x10] sm:$0xf]
      %v237 = vld [vmem:[%s192 + $0x14] sm:$0x1]
      %v238 = vld [vmem:[%s192 + $0x18] sm:$0xf]
      %v239 = vld [vmem:[%s192 + $0x1c] sm:$0xf]
      %v240 = vld [vmem:[%s192 + $0x20] sm:$0x1]
      %v241 = vld [vmem:[%s192 + $0x24] sm:$0xf]
      %v242 = vld [vmem:[%s192 + $0x28] sm:$0xf]
      %v243 = vld [vmem:[%s192 + $0x2c] sm:$0x1]
      %v244 = vld [vmem:[%s192 + $0x30] sm:$0xf]
      %v245 = vld [vmem:[%s192 + $0x34] sm:$0xf]
      %v246 = vld [vmem:[%s192 + $0x38] sm:$0x1]
      %v247 = vld [vmem:[%s192 + $0x3c] sm:$0xf]
      %v248 = vld [vmem:[%s192 + $0x40] sm:$0xf]
      %v249 = vld [vmem:[%s192 + $0x44] sm:$0x1]
      %v250 = vld [vmem:[%s192 + $0x48] sm:$0xf]
      %v251 = vld [vmem:[%s192 + $0x4c] sm:$0xf]
      %v252 = vld [vmem:[%s192 + $0x50] sm:$0x1]
      %v253 = vld [vmem:[%s192 + $0x54] sm:$0xf]
      %v254 = vld [vmem:[%s192 + $0x58] sm:$0xf]
      %v255 = vld [vmem:[%s192 + $0x5c] sm:$0x1]
      %vm256 = vsmask.f32 3328
      %vm257 = vsmask.f32 7440
      %vm258 = vmor %vm256, %vm257
      %v260 = vshrl.u32 %v232, 16
      %v262 = vrot.slane %v260, 4
      %v263 = vshll.u32 %v232, 16
      %v265 = vrot.slane %v263, 5
      %v266 = vor.u32 %v262, %v265
      %v267 = vrot.slane %v266, 4
      %v269 = vshll.u32 %v233, 16
      %v271 = vrot.slane %v269, 5
      %v272 = vsel %vm258, %v267, %v271
      %v273 = vshrl.u32 %v233, 16
      %v275 = vrot.slane %v273, 4
      %v276 = vor.u32 %v275, %v271
      %v277 = vrot.slane %v276, 4
      %v279 = vshll.u32 %v234, 16
      %v281 = vrot.slane %v279, 5
      %v282 = vsel %vm258, %v277, %v281
      %v284 = vshrl.u32 %v235, 16
      %v286 = vrot.slane %v284, 4
      %v287 = vshll.u32 %v235, 16
      %v289 = vrot.slane %v287, 5
      %v290 = vor.u32 %v286, %v289
      %v291 = vrot.slane %v290, 4
      %v293 = vshll.u32 %v236, 16
      %v295 = vrot.slane %v293, 5
      %v296 = vsel %vm258, %v291, %v295
      %v297 = vshrl.u32 %v236, 16
      %v299 = vrot.slane %v297, 4
      %v300 = vor.u32 %v299, %v295
      %v301 = vrot.slane %v300, 4
      %v303 = vshll.u32 %v237, 16
      %v305 = vrot.slane %v303, 5
      %v306 = vsel %vm258, %v301, %v305
      %v308 = vshrl.u32 %v238, 16
      %v310 = vrot.slane %v308, 4
      %v311 = vshll.u32 %v238, 16
      %v313 = vrot.slane %v311, 5
      %v314 = vor.u32 %v310, %v313
      %v315 = vrot.slane %v314, 4
      %v317 = vshll.u32 %v239, 16
      %v319 = vrot.slane %v317, 5
      %v320 = vsel %vm258, %v315, %v319
      %v321 = vshrl.u32 %v239, 16
      %v323 = vrot.slane %v321, 4
      %v324 = vor.u32 %v323, %v319
      %v325 = vrot.slane %v324, 4
      %v327 = vshll.u32 %v240, 16
      %v329 = vrot.slane %v327, 5
      %v330 = vsel %vm258, %v325, %v329
      %v332 = vshrl.u32 %v241, 16
      %v334 = vrot.slane %v332, 4
      %v335 = vshll.u32 %v241, 16
      %v337 = vrot.slane %v335, 5
      %v338 = vor.u32 %v334, %v337
      %v339 = vrot.slane %v338, 4
      %v341 = vshll.u32 %v242, 16
      %v343 = vrot.slane %v341, 5
      %v344 = vsel %vm258, %v339, %v343
      %v345 = vshrl.u32 %v242, 16
      %v347 = vrot.slane %v345, 4
      %v348 = vor.u32 %v347, %v343
      %v349 = vrot.slane %v348, 4
      %v351 = vshll.u32 %v243, 16
      %v353 = vrot.slane %v351, 5
      %v354 = vsel %vm258, %v349, %v353
      %v356 = vshrl.u32 %v244, 16
      %v358 = vrot.slane %v356, 4
      %v359 = vshll.u32 %v244, 16
      %v361 = vrot.slane %v359, 5
      %v362 = vor.u32 %v358, %v361
      %v363 = vrot.slane %v362, 4
      %v365 = vshll.u32 %v245, 16
      %v367 = vrot.slane %v365, 5
      %v368 = vsel %vm258, %v363, %v367
      %v369 = vshrl.u32 %v245, 16
      %v371 = vrot.slane %v369, 4
      %v372 = vor.u32 %v371, %v367
      %v373 = vrot.slane %v372, 4
      %v375 = vshll.u32 %v246, 16
      %v377 = vrot.slane %v375, 5
      %v378 = vsel %vm258, %v373, %v377
      %v380 = vshrl.u32 %v247, 16
      %v382 = vrot.slane %v380, 4
      %v383 = vshll.u32 %v247, 16
      %v385 = vrot.slane %v383, 5
      %v386 = vor.u32 %v382, %v385
      %v387 = vrot.slane %v386, 4
      %v389 = vshll.u32 %v248, 16
      %v391 = vrot.slane %v389, 5
      %v392 = vsel %vm258, %v387, %v391
      %v393 = vshrl.u32 %v248, 16
      %v395 = vrot.slane %v393, 4
      %v396 = vor.u32 %v395, %v391
      %v397 = vrot.slane %v396, 4
      %v399 = vshll.u32 %v249, 16
      %v401 = vrot.slane %v399, 5
      %v402 = vsel %vm258, %v397, %v401
      %v404 = vshrl.u32 %v250, 16
      %v406 = vrot.slane %v404, 4
      %v407 = vshll.u32 %v250, 16
      %v409 = vrot.slane %v407, 5
      %v410 = vor.u32 %v406, %v409
      %v411 = vrot.slane %v410, 4
      %v413 = vshll.u32 %v251, 16
      %v415 = vrot.slane %v413, 5
      %v416 = vsel %vm258, %v411, %v415
      %v417 = vshrl.u32 %v251, 16
      %v419 = vrot.slane %v417, 4
      %v420 = vor.u32 %v419, %v415
      %v421 = vrot.slane %v420, 4
      %v423 = vshll.u32 %v252, 16
      %v425 = vrot.slane %v423, 5
      %v426 = vsel %vm258, %v421, %v425
      %v428 = vshrl.u32 %v253, 16
      %v430 = vrot.slane %v428, 4
      %v431 = vshll.u32 %v253, 16
      %v433 = vrot.slane %v431, 5
      %v434 = vor.u32 %v430, %v433
      %v435 = vrot.slane %v434, 4
      %v437 = vshll.u32 %v254, 16
      %v439 = vrot.slane %v437, 5
      %v440 = vsel %vm258, %v435, %v439
      %v441 = vshrl.u32 %v254, 16
      %v443 = vrot.slane %v441, 4
      %v444 = vor.u32 %v443, %v439
      %v445 = vrot.slane %v444, 4
      %v447 = vshll.u32 %v255, 16
      %v449 = vrot.slane %v447, 5
      %v450 = vsel %vm258, %v445, %v449
      %451 = vrot.lane.b32.xlu0 %v272, 4
      %v452 = vpop.permute.xlu0 %451
      %453 = vrot.lane.b32.xlu0 %v282, 4
      %v454 = vpop.permute.xlu0 %453
      %455 = vrot.lane.b32.xlu0 %v296, 4
      %v456 = vpop.permute.xlu0 %455
      %457 = vrot.lane.b32.xlu0 %v306, 4
      %v458 = vpop.permute.xlu0 %457
      %459 = vrot.lane.b32.xlu0 %v320, 4
      %v460 = vpop.permute.xlu0 %459
      %461 = vrot.lane.b32.xlu0 %v330, 4
      %v462 = vpop.permute.xlu0 %461
      %463 = vrot.lane.b32.xlu0 %v344, 4
      %v464 = vpop.permute.xlu0 %463
      %465 = vrot.lane.b32.xlu0 %v354, 4
      %v466 = vpop.permute.xlu0 %465
      %467 = vrot.lane.b32.xlu0 %v368, 4
      %v468 = vpop.permute.xlu0 %467
      %469 = vrot.lane.b32.xlu0 %v378, 4
      %v470 = vpop.permute.xlu0 %469
      %471 = vrot.lane.b32.xlu0 %v392, 4
      %v472 = vpop.permute.xlu0 %471
      %473 = vrot.lane.b32.xlu0 %v402, 4
      %v474 = vpop.permute.xlu0 %473
      %475 = vrot.lane.b32.xlu0 %v416, 4
      %v476 = vpop.permute.xlu0 %475
      %477 = vrot.lane.b32.xlu0 %v426, 4
      %v478 = vpop.permute.xlu0 %477
      %479 = vrot.lane.b32.xlu0 %v440, 4
      %v480 = vpop.permute.xlu0 %479
      %481 = vrot.lane.b32.xlu0 %v450, 4
      %v482 = vpop.permute.xlu0 %481
      %vm499 = vcmask 60448
      %500 = vst.msk [vmem:[#allocation2] sm:$0xf] %vm499, %v452
      %501 = vst.msk [vmem:[#allocation2 + $0x4] sm:$0xf] %vm499, %v454
      %502 = vst.msk [vmem:[#allocation2 + $0x8] sm:$0xf] %vm499, %v456
      %503 = vst.msk [vmem:[#allocation2 + $0xc] sm:$0xf] %vm499, %v458
      %504 = vst.msk [vmem:[#allocation2 + $0x10] sm:$0xf] %vm499, %v460
      %505 = vst.msk [vmem:[#allocation2 + $0x14] sm:$0xf] %vm499, %v462
      %506 = vst.msk [vmem:[#allocation2 + $0x18] sm:$0xf] %vm499, %v464
      %507 = vst.msk [vmem:[#allocation2 + $0x1c] sm:$0xf] %vm499, %v466
      %508 = vst.msk [vmem:[#allocation2 + $0x20] sm:$0xf] %vm499, %v468
      %509 = vst.msk [vmem:[#allocation2 + $0x24] sm:$0xf] %vm499, %v470
      %510 = vst.msk [vmem:[#allocation2 + $0x28] sm:$0xf] %vm499, %v472
      %511 = vst.msk [vmem:[#allocation2 + $0x2c] sm:$0xf] %vm499, %v474
      %512 = vst.msk [vmem:[#allocation2 + $0x30] sm:$0xf] %vm499, %v476
      %513 = vst.msk [vmem:[#allocation2 + $0x34] sm:$0xf] %vm499, %v478
      %514 = vst.msk [vmem:[#allocation2 + $0x38] sm:$0xf] %vm499, %v480
      %515 = vst.msk [vmem:[#allocation2 + $0x3c] sm:$0xf] %vm499, %v482
      %v516 = vld [vmem:[%s192] sm:$0xe]
      %v517 = vld [vmem:[%s192 + $0x4] sm:$0xf]
      %v518 = vld [vmem:[%s192 + $0x8] sm:$0x1]
      %v519 = vld [vmem:[%s192 + $0xc] sm:$0xe]
      %v520 = vld [vmem:[%s192 + $0x10] sm:$0xf]
      %v521 = vld [vmem:[%s192 + $0x14] sm:$0x1]
      %v522 = vld [vmem:[%s192 + $0x18] sm:$0xe]
      %v523 = vld [vmem:[%s192 + $0x1c] sm:$0xf]
      %v524 = vld [vmem:[%s192 + $0x20] sm:$0x1]
      %v525 = vld [vmem:[%s192 + $0x24] sm:$0xe]
      %v526 = vld [vmem:[%s192 + $0x28] sm:$0xf]
      %v527 = vld [vmem:[%s192 + $0x2c] sm:$0x1]
      %v528 = vld [vmem:[%s192 + $0x30] sm:$0xe]
      %v529 = vld [vmem:[%s192 + $0x34] sm:$0xf]
      %v530 = vld [vmem:[%s192 + $0x38] sm:$0x1]
      %v531 = vld [vmem:[%s192 + $0x3c] sm:$0xe]
      %v532 = vld [vmem:[%s192 + $0x40] sm:$0xf]
      %v533 = vld [vmem:[%s192 + $0x44] sm:$0x1]
      %v534 = vld [vmem:[%s192 + $0x48] sm:$0xe]
      %v535 = vld [vmem:[%s192 + $0x4c] sm:$0xf]
      %v536 = vld [vmem:[%s192 + $0x50] sm:$0x1]
      %v537 = vld [vmem:[%s192 + $0x54] sm:$0xe]
      %v538 = vld [vmem:[%s192 + $0x58] sm:$0xf]
      %v539 = vld [vmem:[%s192 + $0x5c] sm:$0x1]
      %vm564 = vcmask 1042432
      %vm565 = vcmask 1046532
      %vm566 = vmor %vm564, %vm565
      %v567 = vrot.slane %v516, 5
      %v568 = vrot.slane %v567, 4
      %v569 = vrot.slane %v517, 5
      %v570 = vsel %vm566, %v568, %v569
      %v571 = vrot.slane %v569, 4
      %v572 = vrot.slane %v518, 5
      %v573 = vsel %vm566, %v571, %v572
      %v574 = vrot.slane %v519, 5
      %v575 = vrot.slane %v574, 4
      %v576 = vrot.slane %v520, 5
      %v577 = vsel %vm566, %v575, %v576
      %v578 = vrot.slane %v576, 4
      %v579 = vrot.slane %v521, 5
      %v580 = vsel %vm566, %v578, %v579
      %v581 = vrot.slane %v522, 5
      %v582 = vrot.slane %v581, 4
      %v583 = vrot.slane %v523, 5
      %v584 = vsel %vm566, %v582, %v583
      %v585 = vrot.slane %v583, 4
      %v586 = vrot.slane %v524, 5
      %v587 = vsel %vm566, %v585, %v586
      %v588 = vrot.slane %v525, 5
      %v589 = vrot.slane %v588, 4
      %v590 = vrot.slane %v526, 5
      %v591 = vsel %vm566, %v589, %v590
      %v592 = vrot.slane %v590, 4
      %v593 = vrot.slane %v527, 5
      %v594 = vsel %vm566, %v592, %v593
      %v595 = vrot.slane %v528, 5
      %v596 = vrot.slane %v595, 4
      %v597 = vrot.slane %v529, 5
      %v598 = vsel %vm566, %v596, %v597
      %v599 = vrot.slane %v597, 4
      %v600 = vrot.slane %v530, 5
      %v601 = vsel %vm566, %v599, %v600
      %v602 = vrot.slane %v531, 5
      %v603 = vrot.slane %v602, 4
      %v604 = vrot.slane %v532, 5
      %v605 = vsel %vm566, %v603, %v604
      %v606 = vrot.slane %v604, 4
      %v607 = vrot.slane %v533, 5
      %v608 = vsel %vm566, %v606, %v607
      %v609 = vrot.slane %v534, 5
      %v610 = vrot.slane %v609, 4
      %v611 = vrot.slane %v535, 5
      %v612 = vsel %vm566, %v610, %v611
      %v613 = vrot.slane %v611, 4
      %v614 = vrot.slane %v536, 5
      %v615 = vsel %vm566, %v613, %v614
      %v616 = vrot.slane %v537, 5
      %v617 = vrot.slane %v616, 4
      %v618 = vrot.slane %v538, 5
      %v619 = vsel %vm566, %v617, %v618
      %v620 = vrot.slane %v618, 4
      %v621 = vrot.slane %v539, 5
      %v622 = vsel %vm566, %v620, %v621
      %623 = vrot.lane.b32.xlu0 %v570, 8
      %v624 = vpop.permute.xlu0 %623
      %625 = vrot.lane.b32.xlu0 %v573, 8
      %v626 = vpop.permute.xlu0 %625
      %627 = vrot.lane.b32.xlu0 %v577, 8
      %v628 = vpop.permute.xlu0 %627
      %629 = vrot.lane.b32.xlu0 %v580, 8
      %v630 = vpop.permute.xlu0 %629
      %631 = vrot.lane.b32.xlu0 %v584, 8
      %v632 = vpop.permute.xlu0 %631
      %633 = vrot.lane.b32.xlu0 %v587, 8
      %v634 = vpop.permute.xlu0 %633
      %635 = vrot.lane.b32.xlu0 %v591, 8
      %v636 = vpop.permute.xlu0 %635
      %637 = vrot.lane.b32.xlu0 %v594, 8
      %v638 = vpop.permute.xlu0 %637
      %639 = vrot.lane.b32.xlu0 %v598, 8
      %v640 = vpop.permute.xlu0 %639
      %641 = vrot.lane.b32.xlu0 %v601, 8
      %v642 = vpop.permute.xlu0 %641
      %643 = vrot.lane.b32.xlu0 %v605, 8
      %v644 = vpop.permute.xlu0 %643
      %645 = vrot.lane.b32.xlu0 %v608, 8
      %v646 = vpop.permute.xlu0 %645
      %647 = vrot.lane.b32.xlu0 %v612, 8
      %v648 = vpop.permute.xlu0 %647
      %649 = vrot.lane.b32.xlu0 %v615, 8
      %v650 = vpop.permute.xlu0 %649
      %651 = vrot.lane.b32.xlu0 %v619, 8
      %v652 = vpop.permute.xlu0 %651
      %653 = vrot.lane.b32.xlu0 %v622, 8
      %v654 = vpop.permute.xlu0 %653
      %vm671 = vcmask 93248
      %672 = vst.msk [vmem:[#allocation2] sm:$0xf] %vm671, %v624
      %673 = vst.msk [vmem:[#allocation2 + $0x4] sm:$0xf] %vm671, %v626
      %674 = vst.msk [vmem:[#allocation2 + $0x8] sm:$0xf] %vm671, %v628
      %675 = vst.msk [vmem:[#allocation2 + $0xc] sm:$0xf] %vm671, %v630
      %676 = vst.msk [vmem:[#allocation2 + $0x10] sm:$0xf] %vm671, %v632
      %677 = vst.msk [vmem:[#allocation2 + $0x14] sm:$0xf] %vm671, %v634
      %678 = vst.msk [vmem:[#allocation2 + $0x18] sm:$0xf] %vm671, %v636
      %679 = vst.msk [vmem:[#allocation2 + $0x1c] sm:$0xf] %vm671, %v638
      %680 = vst.msk [vmem:[#allocation2 + $0x20] sm:$0xf] %vm671, %v640
      %681 = vst.msk [vmem:[#allocation2 + $0x24] sm:$0xf] %vm671, %v642
      %682 = vst.msk [vmem:[#allocation2 + $0x28] sm:$0xf] %vm671, %v644
      %683 = vst.msk [vmem:[#allocation2 + $0x2c] sm:$0xf] %vm671, %v646
      %684 = vst.msk [vmem:[#allocation2 + $0x30] sm:$0xf] %vm671, %v648
      %685 = vst.msk [vmem:[#allocation2 + $0x34] sm:$0xf] %vm671, %v650
      %686 = vst.msk [vmem:[#allocation2 + $0x38] sm:$0xf] %vm671, %v652
      %687 = vst.msk [vmem:[#allocation2 + $0x3c] sm:$0xf] %vm671, %v654
      %s688 = scalar_lea.vmem %s192, 12
      %v689 = vld [vmem:[%s688] sm:$0xf]
      %v690 = vld [vmem:[%s688 + $0x4] sm:$0xf]
      %v691 = vld [vmem:[%s688 + $0xc] sm:$0xf]
      %v692 = vld [vmem:[%s688 + $0x10] sm:$0xf]
      %v693 = vld [vmem:[%s688 + $0x18] sm:$0xf]
      %v694 = vld [vmem:[%s688 + $0x1c] sm:$0xf]
      %v695 = vld [vmem:[%s688 + $0x24] sm:$0xf]
      %v696 = vld [vmem:[%s688 + $0x28] sm:$0xf]
      %v697 = vld [vmem:[%s688 + $0x30] sm:$0xf]
      %v698 = vld [vmem:[%s688 + $0x34] sm:$0xf]
      %v699 = vld [vmem:[%s688 + $0x3c] sm:$0xf]
      %v700 = vld [vmem:[%s688 + $0x40] sm:$0xf]
      %v701 = vld [vmem:[%s688 + $0x48] sm:$0xf]
      %v702 = vld [vmem:[%s688 + $0x4c] sm:$0xf]
      %v703 = vld [vmem:[%s688 + $0x54] sm:$0xf]
      %v704 = vld [vmem:[%s688 + $0x58] sm:$0xf]
      %721 = vrot.lane.b32.xlu0 %v689, 12
      %v722 = vpop.permute.xlu0 %721
      %723 = vrot.lane.b32.xlu0 %v690, 12
      %v724 = vpop.permute.xlu0 %723
      %725 = vrot.lane.b32.xlu0 %v691, 12
      %v726 = vpop.permute.xlu0 %725
      %727 = vrot.lane.b32.xlu0 %v692, 12
      %v728 = vpop.permute.xlu0 %727
      %729 = vrot.lane.b32.xlu0 %v693, 12
      %v730 = vpop.permute.xlu0 %729
      %731 = vrot.lane.b32.xlu0 %v694, 12
      %v732 = vpop.permute.xlu0 %731
      %733 = vrot.lane.b32.xlu0 %v695, 12
      %v734 = vpop.permute.xlu0 %733
      %735 = vrot.lane.b32.xlu0 %v696, 12
      %v736 = vpop.permute.xlu0 %735
      %737 = vrot.lane.b32.xlu0 %v697, 12
      %v738 = vpop.permute.xlu0 %737
      %739 = vrot.lane.b32.xlu0 %v698, 12
      %v740 = vpop.permute.xlu0 %739
      %741 = vrot.lane.b32.xlu0 %v699, 12
      %v742 = vpop.permute.xlu0 %741
      %743 = vrot.lane.b32.xlu0 %v700, 12
      %v744 = vpop.permute.xlu0 %743
      %745 = vrot.lane.b32.xlu0 %v701, 12
      %v746 = vpop.permute.xlu0 %745
      %747 = vrot.lane.b32.xlu0 %v702, 12
      %v748 = vpop.permute.xlu0 %747
      %749 = vrot.lane.b32.xlu0 %v703, 12
      %v750 = vpop.permute.xlu0 %749
      %751 = vrot.lane.b32.xlu0 %v704, 12
      %v752 = vpop.permute.xlu0 %751
      %vm769 = vcmask 126048
      %770 = vst.msk [vmem:[#allocation2] sm:$0xf] %vm769, %v722
      %771 = vst.msk [vmem:[#allocation2 + $0x4] sm:$0xf] %vm769, %v724
      %772 = vst.msk [vmem:[#allocation2 + $0x8] sm:$0xf] %vm769, %v726
      %773 = vst.msk [vmem:[#allocation2 + $0xc] sm:$0xf] %vm769, %v728
      %774 = vst.msk [vmem:[#allocation2 + $0x10] sm:$0xf] %vm769, %v730
      %775 = vst.msk [vmem:[#allocation2 + $0x14] sm:$0xf] %vm769, %v732
      %776 = vst.msk [vmem:[#allocation2 + $0x18] sm:$0xf] %vm769, %v734
      %777 = vst.msk [vmem:[#allocation2 + $0x1c] sm:$0xf] %vm769, %v736
      %778 = vst.msk [vmem:[#allocation2 + $0x20] sm:$0xf] %vm769, %v738
      %779 = vst.msk [vmem:[#allocation2 + $0x24] sm:$0xf] %vm769, %v740
      %780 = vst.msk [vmem:[#allocation2 + $0x28] sm:$0xf] %vm769, %v742
      %781 = vst.msk [vmem:[#allocation2 + $0x2c] sm:$0xf] %vm769, %v744
      %782 = vst.msk [vmem:[#allocation2 + $0x30] sm:$0xf] %vm769, %v746
      %783 = vst.msk [vmem:[#allocation2 + $0x34] sm:$0xf] %vm769, %v748
      %784 = vst.msk [vmem:[#allocation2 + $0x38] sm:$0xf] %vm769, %v750
      %785 = vst.msk [vmem:[#allocation2 + $0x3c] sm:$0xf] %vm769, %v752
      %v786 = vld [vmem:[%s688] sm:$0xf]
      %v787 = vld [vmem:[%s688 + $0x4] sm:$0xf]
      %v788 = vld [vmem:[%s688 + $0x8] sm:$0x1]
      %v789 = vld [vmem:[%s688 + $0xc] sm:$0xf]
      %v790 = vld [vmem:[%s688 + $0x10] sm:$0xf]
      %v791 = vld [vmem:[%s688 + $0x14] sm:$0x1]
      %v792 = vld [vmem:[%s688 + $0x18] sm:$0xf]
      %v793 = vld [vmem:[%s688 + $0x1c] sm:$0xf]
      %v794 = vld [vmem:[%s688 + $0x20] sm:$0x1]
      %v795 = vld [vmem:[%s688 + $0x24] sm:$0xf]
      %v796 = vld [vmem:[%s688 + $0x28] sm:$0xf]
      %v797 = vld [vmem:[%s688 + $0x2c] sm:$0x1]
      %v798 = vld [vmem:[%s688 + $0x30] sm:$0xf]
      %v799 = vld [vmem:[%s688 + $0x34] sm:$0xf]
      %v800 = vld [vmem:[%s688 + $0x38] sm:$0x1]
      %v801 = vld [vmem:[%s688 + $0x3c] sm:$0xf]
      %v802 = vld [vmem:[%s688 + $0x40] sm:$0xf]
      %v803 = vld [vmem:[%s688 + $0x44] sm:$0x1]
      %v804 = vld [vmem:[%s688 + $0x48] sm:$0xf]
      %v805 = vld [vmem:[%s688 + $0x4c] sm:$0xf]
      %v806 = vld [vmem:[%s688 + $0x50] sm:$0x1]
      %v807 = vld [vmem:[%s688 + $0x54] sm:$0xf]
      %v808 = vld [vmem:[%s688 + $0x58] sm:$0xf]
      %v809 = vld [vmem:[%s688 + $0x5c] sm:$0x1]
      %v811 = vshrl.u32 %v786, 16
      %v813 = vrot.slane %v811, 4
      %v814 = vshll.u32 %v786, 16
      %v816 = vrot.slane %v814, 5
      %v817 = vor.u32 %v813, %v816
      %v818 = vrot.slane %v817, 4
      %v820 = vshll.u32 %v787, 16
      %v822 = vrot.slane %v820, 5
      %v823 = vsel %vm258, %v818, %v822
      %v824 = vshrl.u32 %v787, 16
      %v826 = vrot.slane %v824, 4
      %v827 = vor.u32 %v826, %v822
      %v828 = vrot.slane %v827, 4
      %v830 = vshll.u32 %v788, 16
      %v832 = vrot.slane %v830, 5
      %v833 = vsel %vm258, %v828, %v832
      %v835 = vshrl.u32 %v789, 16
      %v837 = vrot.slane %v835, 4
      %v838 = vshll.u32 %v789, 16
      %v840 = vrot.slane %v838, 5
      %v841 = vor.u32 %v837, %v840
      %v842 = vrot.slane %v841, 4
      %v844 = vshll.u32 %v790, 16
      %v846 = vrot.slane %v844, 5
      %v847 = vsel %vm258, %v842, %v846
      %v848 = vshrl.u32 %v790, 16
      %v850 = vrot.slane %v848, 4
      %v851 = vor.u32 %v850, %v846
      %v852 = vrot.slane %v851, 4
      %v854 = vshll.u32 %v791, 16
      %v856 = vrot.slane %v854, 5
      %v857 = vsel %vm258, %v852, %v856
      %v859 = vshrl.u32 %v792, 16
      %v861 = vrot.slane %v859, 4
      %v862 = vshll.u32 %v792, 16
      %v864 = vrot.slane %v862, 5
      %v865 = vor.u32 %v861, %v864
      %v866 = vrot.slane %v865, 4
      %v868 = vshll.u32 %v793, 16
      %v870 = vrot.slane %v868, 5
      %v871 = vsel %vm258, %v866, %v870
      %v872 = vshrl.u32 %v793, 16
      %v874 = vrot.slane %v872, 4
      %v875 = vor.u32 %v874, %v870
      %v876 = vrot.slane %v875, 4
      %v878 = vshll.u32 %v794, 16
      %v880 = vrot.slane %v878, 5
      %v881 = vsel %vm258, %v876, %v880
      %v883 = vshrl.u32 %v795, 16
      %v885 = vrot.slane %v883, 4
      %v886 = vshll.u32 %v795, 16
      %v888 = vrot.slane %v886, 5
      %v889 = vor.u32 %v885, %v888
      %v890 = vrot.slane %v889, 4
      %v892 = vshll.u32 %v796, 16
      %v894 = vrot.slane %v892, 5
      %v895 = vsel %vm258, %v890, %v894
      %v896 = vshrl.u32 %v796, 16
      %v898 = vrot.slane %v896, 4
      %v899 = vor.u32 %v898, %v894
      %v900 = vrot.slane %v899, 4
      %v902 = vshll.u32 %v797, 16
      %v904 = vrot.slane %v902, 5
      %v905 = vsel %vm258, %v900, %v904
      %v907 = vshrl.u32 %v798, 16
      %v909 = vrot.slane %v907, 4
      %v910 = vshll.u32 %v798, 16
      %v912 = vrot.slane %v910, 5
      %v913 = vor.u32 %v909, %v912
      %v914 = vrot.slane %v913, 4
      %v916 = vshll.u32 %v799, 16
      %v918 = vrot.slane %v916, 5
      %v919 = vsel %vm258, %v914, %v918
      %v920 = vshrl.u32 %v799, 16
      %v922 = vrot.slane %v920, 4
      %v923 = vor.u32 %v922, %v918
      %v924 = vrot.slane %v923, 4
      %v926 = vshll.u32 %v800, 16
      %v928 = vrot.slane %v926, 5
      %v929 = vsel %vm258, %v924, %v928
      %v931 = vshrl.u32 %v801, 16
      %v933 = vrot.slane %v931, 4
      %v934 = vshll.u32 %v801, 16
      %v936 = vrot.slane %v934, 5
      %v937 = vor.u32 %v933, %v936
      %v938 = vrot.slane %v937, 4
      %v940 = vshll.u32 %v802, 16
      %v942 = vrot.slane %v940, 5
      %v943 = vsel %vm258, %v938, %v942
      %v944 = vshrl.u32 %v802, 16
      %v946 = vrot.slane %v944, 4
      %v947 = vor.u32 %v946, %v942
      %v948 = vrot.slane %v947, 4
      %v950 = vshll.u32 %v803, 16
      %v952 = vrot.slane %v950, 5
      %v953 = vsel %vm258, %v948, %v952
      %v955 = vshrl.u32 %v804, 16
      %v957 = vrot.slane %v955, 4
      %v958 = vshll.u32 %v804, 16
      %v960 = vrot.slane %v958, 5
      %v961 = vor.u32 %v957, %v960
      %v962 = vrot.slane %v961, 4
      %v964 = vshll.u32 %v805, 16
      %v966 = vrot.slane %v964, 5
      %v967 = vsel %vm258, %v962, %v966
      %v968 = vshrl.u32 %v805, 16
      %v970 = vrot.slane %v968, 4
      %v971 = vor.u32 %v970, %v966
      %v972 = vrot.slane %v971, 4
      %v974 = vshll.u32 %v806, 16
      %v976 = vrot.slane %v974, 5
      %v977 = vsel %vm258, %v972, %v976
      %v979 = vshrl.u32 %v807, 16
      %v981 = vrot.slane %v979, 4
      %v982 = vshll.u32 %v807, 16
      %v984 = vrot.slane %v982, 5
      %v985 = vor.u32 %v981, %v984
      %v986 = vrot.slane %v985, 4
      %v988 = vshll.u32 %v808, 16
      %v990 = vrot.slane %v988, 5
      %v991 = vsel %vm258, %v986, %v990
      %v992 = vshrl.u32 %v808, 16
      %v994 = vrot.slane %v992, 4
      %v995 = vor.u32 %v994, %v990
      %v996 = vrot.slane %v995, 4
      %v998 = vshll.u32 %v809, 16
      %v1000 = vrot.slane %v998, 5
      %v1001 = vsel %vm258, %v996, %v1000
      %1002 = vrot.lane.b32.xlu0 %v823, 16
      %v1003 = vpop.permute.xlu0 %1002
      %1004 = vrot.lane.b32.xlu0 %v833, 16
      %v1005 = vpop.permute.xlu0 %1004
      %1006 = vrot.lane.b32.xlu0 %v847, 16
      %v1007 = vpop.permute.xlu0 %1006
      %1008 = vrot.lane.b32.xlu0 %v857, 16
      %v1009 = vpop.permute.xlu0 %1008
      %1010 = vrot.lane.b32.xlu0 %v871, 16
      %v1011 = vpop.permute.xlu0 %1010
      %1012 = vrot.lane.b32.xlu0 %v881, 16
      %v1013 = vpop.permute.xlu0 %1012
      %1014 = vrot.lane.b32.xlu0 %v895, 16
      %v1015 = vpop.permute.xlu0 %1014
      %1016 = vrot.lane.b32.xlu0 %v905, 16
      %v1017 = vpop.permute.xlu0 %1016
      %1018 = vrot.lane.b32.xlu0 %v919, 16
      %v1019 = vpop.permute.xlu0 %1018
      %1020 = vrot.lane.b32.xlu0 %v929, 16
      %v1021 = vpop.permute.xlu0 %1020
      %1022 = vrot.lane.b32.xlu0 %v943, 16
      %v1023 = vpop.permute.xlu0 %1022
      %1024 = vrot.lane.b32.xlu0 %v953, 16
      %v1025 = vpop.permute.xlu0 %1024
      %1026 = vrot.lane.b32.xlu0 %v967, 16
      %v1027 = vpop.permute.xlu0 %1026
      %1028 = vrot.lane.b32.xlu0 %v977, 16
      %v1029 = vpop.permute.xlu0 %1028
      %1030 = vrot.lane.b32.xlu0 %v991, 16
      %v1031 = vpop.permute.xlu0 %1030
      %1032 = vrot.lane.b32.xlu0 %v1001, 16
      %v1033 = vpop.permute.xlu0 %1032
      %vm1050 = vcmask 158848
      %1051 = vst.msk [vmem:[#allocation2] sm:$0xf] %vm1050, %v1003
      %1052 = vst.msk [vmem:[#allocation2 + $0x4] sm:$0xf] %vm1050, %v1005
      %1053 = vst.msk [vmem:[#allocation2 + $0x8] sm:$0xf] %vm1050, %v1007
      %1054 = vst.msk [vmem:[#allocation2 + $0xc] sm:$0xf] %vm1050, %v1009
      %1055 = vst.msk [vmem:[#allocation2 + $0x10] sm:$0xf] %vm1050, %v1011
      %1056 = vst.msk [vmem:[#allocation2 + $0x14] sm:$0xf] %vm1050, %v1013
      %1057 = vst.msk [vmem:[#allocation2 + $0x18] sm:$0xf] %vm1050, %v1015
      %1058 = vst.msk [vmem:[#allocation2 + $0x1c] sm:$0xf] %vm1050, %v1017
      %1059 = vst.msk [vmem:[#allocation2 + $0x20] sm:$0xf] %vm1050, %v1019
      %1060 = vst.msk [vmem:[#allocation2 + $0x24] sm:$0xf] %vm1050, %v1021
      %1061 = vst.msk [vmem:[#allocation2 + $0x28] sm:$0xf] %vm1050, %v1023
      %1062 = vst.msk [vmem:[#allocation2 + $0x2c] sm:$0xf] %vm1050, %v1025
      %1063 = vst.msk [vmem:[#allocation2 + $0x30] sm:$0xf] %vm1050, %v1027
      %1064 = vst.msk [vmem:[#allocation2 + $0x34] sm:$0xf] %vm1050, %v1029
      %1065 = vst.msk [vmem:[#allocation2 + $0x38] sm:$0xf] %vm1050, %v1031
      %1066 = vst.msk [vmem:[#allocation2 + $0x3c] sm:$0xf] %vm1050, %v1033
      %v1067 = vld [vmem:[%s688] sm:$0xe]
      %v1068 = vld [vmem:[%s688 + $0x4] sm:$0xf]
      %v1069 = vld [vmem:[%s688 + $0x8] sm:$0x1]
      %v1070 = vld [vmem:[%s688 + $0xc] sm:$0xe]
      %v1071 = vld [vmem:[%s688 + $0x10] sm:$0xf]
      %v1072 = vld [vmem:[%s688 + $0x14] sm:$0x1]
      %v1073 = vld [vmem:[%s688 + $0x18] sm:$0xe]
      %v1074 = vld [vmem:[%s688 + $0x1c] sm:$0xf]
      %v1075 = vld [vmem:[%s688 + $0x20] sm:$0x1]
      %v1076 = vld [vmem:[%s688 + $0x24] sm:$0xe]
      %v1077 = vld [vmem:[%s688 + $0x28] sm:$0xf]
      %v1078 = vld [vmem:[%s688 + $0x2c] sm:$0x1]
      %v1079 = vld [vmem:[%s688 + $0x30] sm:$0xe]
      %v1080 = vld [vmem:[%s688 + $0x34] sm:$0xf]
      %v1081 = vld [vmem:[%s688 + $0x38] sm:$0x1]
      %v1082 = vld [vmem:[%s688 + $0x3c] sm:$0xe]
      %v1083 = vld [vmem:[%s688 + $0x40] sm:$0xf]
      %v1084 = vld [vmem:[%s688 + $0x44] sm:$0x1]
      %v1085 = vld [vmem:[%s688 + $0x48] sm:$0xe]
      %v1086 = vld [vmem:[%s688 + $0x4c] sm:$0xf]
      %v1087 = vld [vmem:[%s688 + $0x50] sm:$0x1]
      %v1088 = vld [vmem:[%s688 + $0x54] sm:$0xe]
      %v1089 = vld [vmem:[%s688 + $0x58] sm:$0xf]
      %v1090 = vld [vmem:[%s688 + $0x5c] sm:$0x1]
      %v1115 = vrot.slane %v1067, 5
      %v1116 = vrot.slane %v1115, 4
      %v1117 = vrot.slane %v1068, 5
      %v1118 = vsel %vm566, %v1116, %v1117
      %v1119 = vrot.slane %v1117, 4
      %v1120 = vrot.slane %v1069, 5
      %v1121 = vsel %vm566, %v1119, %v1120
      %v1122 = vrot.slane %v1070, 5
      %v1123 = vrot.slane %v1122, 4
      %v1124 = vrot.slane %v1071, 5
      %v1125 = vsel %vm566, %v1123, %v1124
      %v1126 = vrot.slane %v1124, 4
      %v1127 = vrot.slane %v1072, 5
      %v1128 = vsel %vm566, %v1126, %v1127
      %v1129 = vrot.slane %v1073, 5
      %v1130 = vrot.slane %v1129, 4
      %v1131 = vrot.slane %v1074, 5
      %v1132 = vsel %vm566, %v1130, %v1131
      %v1133 = vrot.slane %v1131, 4
      %v1134 = vrot.slane %v1075, 5
      %v1135 = vsel %vm566, %v1133, %v1134
      %v1136 = vrot.slane %v1076, 5
      %v1137 = vrot.slane %v1136, 4
      %v1138 = vrot.slane %v1077, 5
      %v1139 = vsel %vm566, %v1137, %v1138
      %v1140 = vrot.slane %v1138, 4
      %v1141 = vrot.slane %v1078, 5
      %v1142 = vsel %vm566, %v1140, %v1141
      %v1143 = vrot.slane %v1079, 5
      %v1144 = vrot.slane %v1143, 4
      %v1145 = vrot.slane %v1080, 5
      %v1146 = vsel %vm566, %v1144, %v1145
      %v1147 = vrot.slane %v1145, 4
      %v1148 = vrot.slane %v1081, 5
      %v1149 = vsel %vm566, %v1147, %v1148
      %v1150 = vrot.slane %v1082, 5
      %v1151 = vrot.slane %v1150, 4
      %v1152 = vrot.slane %v1083, 5
      %v1153 = vsel %vm566, %v1151, %v1152
      %v1154 = vrot.slane %v1152, 4
      %v1155 = vrot.slane %v1084, 5
      %v1156 = vsel %vm566, %v1154, %v1155
      %v1157 = vrot.slane %v1085, 5
      %v1158 = vrot.slane %v1157, 4
      %v1159 = vrot.slane %v1086, 5
      %v1160 = vsel %vm566, %v1158, %v1159
      %v1161 = vrot.slane %v1159, 4
      %v1162 = vrot.slane %v1087, 5
      %v1163 = vsel %vm566, %v1161, %v1162
      %v1164 = vrot.slane %v1088, 5
      %v1165 = vrot.slane %v1164, 4
      %v1166 = vrot.slane %v1089, 5
      %v1167 = vsel %vm566, %v1165, %v1166
      %v1168 = vrot.slane %v1166, 4
      %v1169 = vrot.slane %v1090, 5
      %v1170 = vsel %vm566, %v1168, %v1169
      %1171 = vrot.lane.b32.xlu0 %v1118, 20
      %v1172 = vpop.permute.xlu0 %1171
      %1173 = vrot.lane.b32.xlu0 %v1121, 20
      %v1174 = vpop.permute.xlu0 %1173
      %1175 = vrot.lane.b32.xlu0 %v1125, 20
      %v1176 = vpop.permute.xlu0 %1175
      %1177 = vrot.lane.b32.xlu0 %v1128, 20
      %v1178 = vpop.permute.xlu0 %1177
      %1179 = vrot.lane.b32.xlu0 %v1132, 20
      %v1180 = vpop.permute.xlu0 %1179
      %1181 = vrot.lane.b32.xlu0 %v1135, 20
      %v1182 = vpop.permute.xlu0 %1181
      %1183 = vrot.lane.b32.xlu0 %v1139, 20
      %v1184 = vpop.permute.xlu0 %1183
      %1185 = vrot.lane.b32.xlu0 %v1142, 20
      %v1186 = vpop.permute.xlu0 %1185
      %1187 = vrot.lane.b32.xlu0 %v1146, 20
      %v1188 = vpop.permute.xlu0 %1187
      %1189 = vrot.lane.b32.xlu0 %v1149, 20
      %v1190 = vpop.permute.xlu0 %1189
      %1191 = vrot.lane.b32.xlu0 %v1153, 20
      %v1192 = vpop.permute.xlu0 %1191
      %1193 = vrot.lane.b32.xlu0 %v1156, 20
      %v1194 = vpop.permute.xlu0 %1193
      %1195 = vrot.lane.b32.xlu0 %v1160, 20
      %v1196 = vpop.permute.xlu0 %1195
      %1197 = vrot.lane.b32.xlu0 %v1163, 20
      %v1198 = vpop.permute.xlu0 %1197
      %1199 = vrot.lane.b32.xlu0 %v1167, 20
      %v1200 = vpop.permute.xlu0 %1199
      %1201 = vrot.lane.b32.xlu0 %v1170, 20
      %v1202 = vpop.permute.xlu0 %1201
      %vm1219 = vcmask 191648
      %1220 = vst.msk [vmem:[#allocation2] sm:$0xf] %vm1219, %v1172
      %1221 = vst.msk [vmem:[#allocation2 + $0x4] sm:$0xf] %vm1219, %v1174
      %1222 = vst.msk [vmem:[#allocation2 + $0x8] sm:$0xf] %vm1219, %v1176
      %1223 = vst.msk [vmem:[#allocation2 + $0xc] sm:$0xf] %vm1219, %v1178
      %1224 = vst.msk [vmem:[#allocation2 + $0x10] sm:$0xf] %vm1219, %v1180
      %1225 = vst.msk [vmem:[#allocation2 + $0x14] sm:$0xf] %vm1219, %v1182
      %1226 = vst.msk [vmem:[#allocation2 + $0x18] sm:$0xf] %vm1219, %v1184
      %1227 = vst.msk [vmem:[#allocation2 + $0x1c] sm:$0xf] %vm1219, %v1186
      %1228 = vst.msk [vmem:[#allocation2 + $0x20] sm:$0xf] %vm1219, %v1188
      %1229 = vst.msk [vmem:[#allocation2 + $0x24] sm:$0xf] %vm1219, %v1190
      %1230 = vst.msk [vmem:[#allocation2 + $0x28] sm:$0xf] %vm1219, %v1192
      %1231 = vst.msk [vmem:[#allocation2 + $0x2c] sm:$0xf] %vm1219, %v1194
      %1232 = vst.msk [vmem:[#allocation2 + $0x30] sm:$0xf] %vm1219, %v1196
      %1233 = vst.msk [vmem:[#allocation2 + $0x34] sm:$0xf] %vm1219, %v1198
      %1234 = vst.msk [vmem:[#allocation2 + $0x38] sm:$0xf] %vm1219, %v1200
      %1235 = vst.msk [vmem:[#allocation2 + $0x3c] sm:$0xf] %vm1219, %v1202
      %s1236 = scalar_lea.vmem %s192, 24
      %v1237 = vld [vmem:[%s1236] sm:$0xf]
      %v1238 = vld [vmem:[%s1236 + $0x4] sm:$0xf]
      %v1239 = vld [vmem:[%s1236 + $0xc] sm:$0xf]
      %v1240 = vld [vmem:[%s1236 + $0x10] sm:$0xf]
      %v1241 = vld [vmem:[%s1236 + $0x18] sm:$0xf]
      %v1242 = vld [vmem:[%s1236 + $0x1c] sm:$0xf]
      %v1243 = vld [vmem:[%s1236 + $0x24] sm:$0xf]
      %v1244 = vld [vmem:[%s1236 + $0x28] sm:$0xf]
      %v1245 = vld [vmem:[%s1236 + $0x30] sm:$0xf]
      %v1246 = vld [vmem:[%s1236 + $0x34] sm:$0xf]
      %v1247 = vld [vmem:[%s1236 + $0x3c] sm:$0xf]
      %v1248 = vld [vmem:[%s1236 + $0x40] sm:$0xf]
      %v1249 = vld [vmem:[%s1236 + $0x48] sm:$0xf]
      %v1250 = vld [vmem:[%s1236 + $0x4c] sm:$0xf]
      %v1251 = vld [vmem:[%s1236 + $0x54] sm:$0xf]
      %v1252 = vld [vmem:[%s1236 + $0x58] sm:$0xf]
      %1269 = vrot.lane.b32.xlu0 %v1237, 24
      %v1270 = vpop.permute.xlu0 %1269
      %1271 = vrot.lane.b32.xlu0 %v1238, 24
      %v1272 = vpop.permute.xlu0 %1271
      %1273 = vrot.lane.b32.xlu0 %v1239, 24
      %v1274 = vpop.permute.xlu0 %1273
      %1275 = vrot.lane.b32.xlu0 %v1240, 24
      %v1276 = vpop.permute.xlu0 %1275
      %1277 = vrot.lane.b32.xlu0 %v1241, 24
      %v1278 = vpop.permute.xlu0 %1277
      %1279 = vrot.lane.b32.xlu0 %v1242, 24
      %v1280 = vpop.permute.xlu0 %1279
      %1281 = vrot.lane.b32.xlu0 %v1243, 24
      %v1282 = vpop.permute.xlu0 %1281
      %1283 = vrot.lane.b32.xlu0 %v1244, 24
      %v1284 = vpop.permute.xlu0 %1283
      %1285 = vrot.lane.b32.xlu0 %v1245, 24
      %v1286 = vpop.permute.xlu0 %1285
      %1287 = vrot.lane.b32.xlu0 %v1246, 24
      %v1288 = vpop.permute.xlu0 %1287
      %1289 = vrot.lane.b32.xlu0 %v1247, 24
      %v1290 = vpop.permute.xlu0 %1289
      %1291 = vrot.lane.b32.xlu0 %v1248, 24
      %v1292 = vpop.permute.xlu0 %1291
      %1293 = vrot.lane.b32.xlu0 %v1249, 24
      %v1294 = vpop.permute.xlu0 %1293
      %1295 = vrot.lane.b32.xlu0 %v1250, 24
      %v1296 = vpop.permute.xlu0 %1295
      %1297 = vrot.lane.b32.xlu0 %v1251, 24
      %v1298 = vpop.permute.xlu0 %1297
      %1299 = vrot.lane.b32.xlu0 %v1252, 24
      %v1300 = vpop.permute.xlu0 %1299
      %vm1317 = vcmask 224448
      %1318 = vst.msk [vmem:[#allocation2] sm:$0xf] %vm1317, %v1270
      %1319 = vst.msk [vmem:[#allocation2 + $0x4] sm:$0xf] %vm1317, %v1272
      %1320 = vst.msk [vmem:[#allocation2 + $0x8] sm:$0xf] %vm1317, %v1274
      %1321 = vst.msk [vmem:[#allocation2 + $0xc] sm:$0xf] %vm1317, %v1276
      %1322 = vst.msk [vmem:[#allocation2 + $0x10] sm:$0xf] %vm1317, %v1278
      %1323 = vst.msk [vmem:[#allocation2 + $0x14] sm:$0xf] %vm1317, %v1280
      %1324 = vst.msk [vmem:[#allocation2 + $0x18] sm:$0xf] %vm1317, %v1282
      %1325 = vst.msk [vmem:[#allocation2 + $0x1c] sm:$0xf] %vm1317, %v1284
      %1326 = vst.msk [vmem:[#allocation2 + $0x20] sm:$0xf] %vm1317, %v1286
      %1327 = vst.msk [vmem:[#allocation2 + $0x24] sm:$0xf] %vm1317, %v1288
      %1328 = vst.msk [vmem:[#allocation2 + $0x28] sm:$0xf] %vm1317, %v1290
      %1329 = vst.msk [vmem:[#allocation2 + $0x2c] sm:$0xf] %vm1317, %v1292
      %1330 = vst.msk [vmem:[#allocation2 + $0x30] sm:$0xf] %vm1317, %v1294
      %1331 = vst.msk [vmem:[#allocation2 + $0x34] sm:$0xf] %vm1317, %v1296
      %1332 = vst.msk [vmem:[#allocation2 + $0x38] sm:$0xf] %vm1317, %v1298
      %1333 = vst.msk [vmem:[#allocation2 + $0x3c] sm:$0xf] %vm1317, %v1300
      %v1334 = vld [vmem:[%s1236] sm:$0xf]
      %v1335 = vld [vmem:[%s1236 + $0x4] sm:$0xf]
      %v1336 = vld [vmem:[%s1236 + $0x8] sm:$0x1]
      %v1337 = vld [vmem:[%s1236 + $0xc] sm:$0xf]
      %v1338 = vld [vmem:[%s1236 + $0x10] sm:$0xf]
      %v1339 = vld [vmem:[%s1236 + $0x14] sm:$0x1]
      %v1340 = vld [vmem:[%s1236 + $0x18] sm:$0xf]
      %v1341 = vld [vmem:[%s1236 + $0x1c] sm:$0xf]
      %v1342 = vld [vmem:[%s1236 + $0x20] sm:$0x1]
      %v1343 = vld [vmem:[%s1236 + $0x24] sm:$0xf]
      %v1344 = vld [vmem:[%s1236 + $0x28] sm:$0xf]
      %v1345 = vld [vmem:[%s1236 + $0x2c] sm:$0x1]
      %v1346 = vld [vmem:[%s1236 + $0x30] sm:$0xf]
      %v1347 = vld [vmem:[%s1236 + $0x34] sm:$0xf]
      %v1348 = vld [vmem:[%s1236 + $0x38] sm:$0x1]
      %v1349 = vld [vmem:[%s1236 + $0x3c] sm:$0xf]
      %v1350 = vld [vmem:[%s1236 + $0x40] sm:$0xf]
      %v1351 = vld [vmem:[%s1236 + $0x44] sm:$0x1]
      %v1352 = vld [vmem:[%s1236 + $0x48] sm:$0xf]
      %v1353 = vld [vmem:[%s1236 + $0x4c] sm:$0xf]
      %v1354 = vld [vmem:[%s1236 + $0x50] sm:$0x1]
      %v1355 = vld [vmem:[%s1236 + $0x54] sm:$0xf]
      %v1356 = vld [vmem:[%s1236 + $0x58] sm:$0xf]
      %v1357 = vld [vmem:[%s1236 + $0x5c] sm:$0x1]
      %v1359 = vshrl.u32 %v1334, 16
      %v1361 = vrot.slane %v1359, 4
      %v1362 = vshll.u32 %v1334, 16
      %v1364 = vrot.slane %v1362, 5
      %v1365 = vor.u32 %v1361, %v1364
      %v1366 = vrot.slane %v1365, 4
      %v1368 = vshll.u32 %v1335, 16
      %v1370 = vrot.slane %v1368, 5
      %v1371 = vsel %vm258, %v1366, %v1370
      %v1372 = vshrl.u32 %v1335, 16
      %v1374 = vrot.slane %v1372, 4
      %v1375 = vor.u32 %v1374, %v1370
      %v1376 = vrot.slane %v1375, 4
      %v1378 = vshll.u32 %v1336, 16
      %v1380 = vrot.slane %v1378, 5
      %v1381 = vsel %vm258, %v1376, %v1380
      %v1383 = vshrl.u32 %v1337, 16
      %v1385 = vrot.slane %v1383, 4
      %v1386 = vshll.u32 %v1337, 16
      %v1388 = vrot.slane %v1386, 5
      %v1389 = vor.u32 %v1385, %v1388
      %v1390 = vrot.slane %v1389, 4
      %v1392 = vshll.u32 %v1338, 16
      %v1394 = vrot.slane %v1392, 5
      %v1395 = vsel %vm258, %v1390, %v1394
      %v1396 = vshrl.u32 %v1338, 16
      %v1398 = vrot.slane %v1396, 4
      %v1399 = vor.u32 %v1398, %v1394
      %v1400 = vrot.slane %v1399, 4
      %v1402 = vshll.u32 %v1339, 16
      %v1404 = vrot.slane %v1402, 5
      %v1405 = vsel %vm258, %v1400, %v1404
      %v1407 = vshrl.u32 %v1340, 16
      %v1409 = vrot.slane %v1407, 4
      %v1410 = vshll.u32 %v1340, 16
      %v1412 = vrot.slane %v1410, 5
      %v1413 = vor.u32 %v1409, %v1412
      %v1414 = vrot.slane %v1413, 4
      %v1416 = vshll.u32 %v1341, 16
      %v1418 = vrot.slane %v1416, 5
      %v1419 = vsel %vm258, %v1414, %v1418
      %v1420 = vshrl.u32 %v1341, 16
      %v1422 = vrot.slane %v1420, 4
      %v1423 = vor.u32 %v1422, %v1418
      %v1424 = vrot.slane %v1423, 4
      %v1426 = vshll.u32 %v1342, 16
      %v1428 = vrot.slane %v1426, 5
      %v1429 = vsel %vm258, %v1424, %v1428
      %v1431 = vshrl.u32 %v1343, 16
      %v1433 = vrot.slane %v1431, 4
      %v1434 = vshll.u32 %v1343, 16
      %v1436 = vrot.slane %v1434, 5
      %v1437 = vor.u32 %v1433, %v1436
      %v1438 = vrot.slane %v1437, 4
      %v1440 = vshll.u32 %v1344, 16
      %v1442 = vrot.slane %v1440, 5
      %v1443 = vsel %vm258, %v1438, %v1442
      %v1444 = vshrl.u32 %v1344, 16
      %v1446 = vrot.slane %v1444, 4
      %v1447 = vor.u32 %v1446, %v1442
      %v1448 = vrot.slane %v1447, 4
      %v1450 = vshll.u32 %v1345, 16
      %v1452 = vrot.slane %v1450, 5
      %v1453 = vsel %vm258, %v1448, %v1452
      %v1455 = vshrl.u32 %v1346, 16
      %v1457 = vrot.slane %v1455, 4
      %v1458 = vshll.u32 %v1346, 16
      %v1460 = vrot.slane %v1458, 5
      %v1461 = vor.u32 %v1457, %v1460
      %v1462 = vrot.slane %v1461, 4
      %v1464 = vshll.u32 %v1347, 16
      %v1466 = vrot.slane %v1464, 5
      %v1467 = vsel %vm258, %v1462, %v1466
      %v1468 = vshrl.u32 %v1347, 16
      %v1470 = vrot.slane %v1468, 4
      %v1471 = vor.u32 %v1470, %v1466
      %v1472 = vrot.slane %v1471, 4
      %v1474 = vshll.u32 %v1348, 16
      %v1476 = vrot.slane %v1474, 5
      %v1477 = vsel %vm258, %v1472, %v1476
      %v1479 = vshrl.u32 %v1349, 16
      %v1481 = vrot.slane %v1479, 4
      %v1482 = vshll.u32 %v1349, 16
      %v1484 = vrot.slane %v1482, 5
      %v1485 = vor.u32 %v1481, %v1484
      %v1486 = vrot.slane %v1485, 4
      %v1488 = vshll.u32 %v1350, 16
      %v1490 = vrot.slane %v1488, 5
      %v1491 = vsel %vm258, %v1486, %v1490
      %v1492 = vshrl.u32 %v1350, 16
      %v1494 = vrot.slane %v1492, 4
      %v1495 = vor.u32 %v1494, %v1490
      %v1496 = vrot.slane %v1495, 4
      %v1498 = vshll.u32 %v1351, 16
      %v1500 = vrot.slane %v1498, 5
      %v1501 = vsel %vm258, %v1496, %v1500
      %v1503 = vshrl.u32 %v1352, 16
      %v1505 = vrot.slane %v1503, 4
      %v1506 = vshll.u32 %v1352, 16
      %v1508 = vrot.slane %v1506, 5
      %v1509 = vor.u32 %v1505, %v1508
      %v1510 = vrot.slane %v1509, 4
      %v1512 = vshll.u32 %v1353, 16
      %v1514 = vrot.slane %v1512, 5
      %v1515 = vsel %vm258, %v1510, %v1514
      %v1516 = vshrl.u32 %v1353, 16
      %v1518 = vrot.slane %v1516, 4
      %v1519 = vor.u32 %v1518, %v1514
      %v1520 = vrot.slane %v1519, 4
      %v1522 = vshll.u32 %v1354, 16
      %v1524 = vrot.slane %v1522, 5
      %v1525 = vsel %vm258, %v1520, %v1524
      %v1527 = vshrl.u32 %v1355, 16
      %v1529 = vrot.slane %v1527, 4
      %v1530 = vshll.u32 %v1355, 16
      %v1532 = vrot.slane %v1530, 5
      %v1533 = vor.u32 %v1529, %v1532
      %v1534 = vrot.slane %v1533, 4
      %v1536 = vshll.u32 %v1356, 16
      %v1538 = vrot.slane %v1536, 5
      %v1539 = vsel %vm258, %v1534, %v1538
      %v1540 = vshrl.u32 %v1356, 16
      %v1542 = vrot.slane %v1540, 4
      %v1543 = vor.u32 %v1542, %v1538
      %v1544 = vrot.slane %v1543, 4
      %v1546 = vshll.u32 %v1357, 16
      %v1548 = vrot.slane %v1546, 5
      %v1549 = vsel %vm258, %v1544, %v1548
      %1550 = vrot.lane.b32.xlu0 %v1371, 28
      %v1551 = vpop.permute.xlu0 %1550
      %1552 = vrot.lane.b32.xlu0 %v1381, 28
      %v1553 = vpop.permute.xlu0 %1552
      %1554 = vrot.lane.b32.xlu0 %v1395, 28
      %v1555 = vpop.permute.xlu0 %1554
      %1556 = vrot.lane.b32.xlu0 %v1405, 28
      %v1557 = vpop.permute.xlu0 %1556
      %1558 = vrot.lane.b32.xlu0 %v1419, 28
      %v1559 = vpop.permute.xlu0 %1558
      %1560 = vrot.lane.b32.xlu0 %v1429, 28
      %v1561 = vpop.permute.xlu0 %1560
      %1562 = vrot.lane.b32.xlu0 %v1443, 28
      %v1563 = vpop.permute.xlu0 %1562
      %1564 = vrot.lane.b32.xlu0 %v1453, 28
      %v1565 = vpop.permute.xlu0 %1564
      %1566 = vrot.lane.b32.xlu0 %v1467, 28
      %v1567 = vpop.permute.xlu0 %1566
      %1568 = vrot.lane.b32.xlu0 %v1477, 28
      %v1569 = vpop.permute.xlu0 %1568
      %1570 = vrot.lane.b32.xlu0 %v1491, 28
      %v1571 = vpop.permute.xlu0 %1570
      %1572 = vrot.lane.b32.xlu0 %v1501, 28
      %v1573 = vpop.permute.xlu0 %1572
      %1574 = vrot.lane.b32.xlu0 %v1515, 28
      %v1575 = vpop.permute.xlu0 %1574
      %1576 = vrot.lane.b32.xlu0 %v1525, 28
      %v1577 = vpop.permute.xlu0 %1576
      %1578 = vrot.lane.b32.xlu0 %v1539, 28
      %v1579 = vpop.permute.xlu0 %1578
      %1580 = vrot.lane.b32.xlu0 %v1549, 28
      %v1581 = vpop.permute.xlu0 %1580
      %vm1598 = vcmask 257248
      %1599 = vst.msk [vmem:[#allocation2] sm:$0xf] %vm1598, %v1551
      %1600 = vst.msk [vmem:[#allocation2 + $0x4] sm:$0xf] %vm1598, %v1553
      %1601 = vst.msk [vmem:[#allocation2 + $0x8] sm:$0xf] %vm1598, %v1555
      %1602 = vst.msk [vmem:[#allocation2 + $0xc] sm:$0xf] %vm1598, %v1557
      %1603 = vst.msk [vmem:[#allocation2 + $0x10] sm:$0xf] %vm1598, %v1559
      %1604 = vst.msk [vmem:[#allocation2 + $0x14] sm:$0xf] %vm1598, %v1561
      %1605 = vst.msk [vmem:[#allocation2 + $0x18] sm:$0xf] %vm1598, %v1563
      %1606 = vst.msk [vmem:[#allocation2 + $0x1c] sm:$0xf] %vm1598, %v1565
      %1607 = vst.msk [vmem:[#allocation2 + $0x20] sm:$0xf] %vm1598, %v1567
      %1608 = vst.msk [vmem:[#allocation2 + $0x24] sm:$0xf] %vm1598, %v1569
      %1609 = vst.msk [vmem:[#allocation2 + $0x28] sm:$0xf] %vm1598, %v1571
      %1610 = vst.msk [vmem:[#allocation2 + $0x2c] sm:$0xf] %vm1598, %v1573
      %1611 = vst.msk [vmem:[#allocation2 + $0x30] sm:$0xf] %vm1598, %v1575
      %1612 = vst.msk [vmem:[#allocation2 + $0x34] sm:$0xf] %vm1598, %v1577
      %1613 = vst.msk [vmem:[#allocation2 + $0x38] sm:$0xf] %vm1598, %v1579
      %1614 = vst.msk [vmem:[#allocation2 + $0x3c] sm:$0xf] %vm1598, %v1581
      %v1615 = vld [vmem:[%s1236] sm:$0xe]
      %v1616 = vld [vmem:[%s1236 + $0x4] sm:$0xf]
      %v1617 = vld [vmem:[%s1236 + $0x8] sm:$0x1]
      %v1618 = vld [vmem:[%s1236 + $0xc] sm:$0xe]
      %v1619 = vld [vmem:[%s1236 + $0x10] sm:$0xf]
      %v1620 = vld [vmem:[%s1236 + $0x14] sm:$0x1]
      %v1621 = vld [vmem:[%s1236 + $0x18] sm:$0xe]
      %v1622 = vld [vmem:[%s1236 + $0x1c] sm:$0xf]
      %v1623 = vld [vmem:[%s1236 + $0x20] sm:$0x1]
      %v1624 = vld [vmem:[%s1236 + $0x24] sm:$0xe]
      %v1625 = vld [vmem:[%s1236 + $0x28] sm:$0xf]
      %v1626 = vld [vmem:[%s1236 + $0x2c] sm:$0x1]
      %v1627 = vld [vmem:[%s1236 + $0x30] sm:$0xe]
      %v1628 = vld [vmem:[%s1236 + $0x34] sm:$0xf]
      %v1629 = vld [vmem:[%s1236 + $0x38] sm:$0x1]
      %v1630 = vld [vmem:[%s1236 + $0x3c] sm:$0xe]
      %v1631 = vld [vmem:[%s1236 + $0x40] sm:$0xf]
      %v1632 = vld [vmem:[%s1236 + $0x44] sm:$0x1]
      %v1633 = vld [vmem:[%s1236 + $0x48] sm:$0xe]
      %v1634 = vld [vmem:[%s1236 + $0x4c] sm:$0xf]
      %v1635 = vld [vmem:[%s1236 + $0x50] sm:$0x1]
      %v1636 = vld [vmem:[%s1236 + $0x54] sm:$0xe]
      %v1637 = vld [vmem:[%s1236 + $0x58] sm:$0xf]
      %v1638 = vld [vmem:[%s1236 + $0x5c] sm:$0x1]
      %v1663 = vrot.slane %v1615, 5
      %v1664 = vrot.slane %v1663, 4
      %v1665 = vrot.slane %v1616, 5
      %v1666 = vsel %vm566, %v1664, %v1665
      %v1667 = vrot.slane %v1665, 4
      %v1668 = vrot.slane %v1617, 5
      %v1669 = vsel %vm566, %v1667, %v1668
      %v1670 = vrot.slane %v1618, 5
      %v1671 = vrot.slane %v1670, 4
      %v1672 = vrot.slane %v1619, 5
      %v1673 = vsel %vm566, %v1671, %v1672
      %v1674 = vrot.slane %v1672, 4
      %v1675 = vrot.slane %v1620, 5
      %v1676 = vsel %vm566, %v1674, %v1675
      %v1677 = vrot.slane %v1621, 5
      %v1678 = vrot.slane %v1677, 4
      %v1679 = vrot.slane %v1622, 5
      %v1680 = vsel %vm566, %v1678, %v1679
      %v1681 = vrot.slane %v1679, 4
      %v1682 = vrot.slane %v1623, 5
      %v1683 = vsel %vm566, %v1681, %v1682
      %v1684 = vrot.slane %v1624, 5
      %v1685 = vrot.slane %v1684, 4
      %v1686 = vrot.slane %v1625, 5
      %v1687 = vsel %vm566, %v1685, %v1686
      %v1688 = vrot.slane %v1686, 4
      %v1689 = vrot.slane %v1626, 5
      %v1690 = vsel %vm566, %v1688, %v1689
      %v1691 = vrot.slane %v1627, 5
      %v1692 = vrot.slane %v1691, 4
      %v1693 = vrot.slane %v1628, 5
      %v1694 = vsel %vm566, %v1692, %v1693
      %v1695 = vrot.slane %v1693, 4
      %v1696 = vrot.slane %v1629, 5
      %v1697 = vsel %vm566, %v1695, %v1696
      %v1698 = vrot.slane %v1630, 5
      %v1699 = vrot.slane %v1698, 4
      %v1700 = vrot.slane %v1631, 5
      %v1701 = vsel %vm566, %v1699, %v1700
      %v1702 = vrot.slane %v1700, 4
      %v1703 = vrot.slane %v1632, 5
      %v1704 = vsel %vm566, %v1702, %v1703
      %v1705 = vrot.slane %v1633, 5
      %v1706 = vrot.slane %v1705, 4
      %v1707 = vrot.slane %v1634, 5
      %v1708 = vsel %vm566, %v1706, %v1707
      %v1709 = vrot.slane %v1707, 4
      %v1710 = vrot.slane %v1635, 5
      %v1711 = vsel %vm566, %v1709, %v1710
      %v1712 = vrot.slane %v1636, 5
      %v1713 = vrot.slane %v1712, 4
      %v1714 = vrot.slane %v1637, 5
      %v1715 = vsel %vm566, %v1713, %v1714
      %v1716 = vrot.slane %v1714, 4
      %v1717 = vrot.slane %v1638, 5
      %v1718 = vsel %vm566, %v1716, %v1717
      %1719 = vrot.lane.b32.xlu0 %v1666, 32
      %v1720 = vpop.permute.xlu0 %1719
      %1721 = vrot.lane.b32.xlu0 %v1669, 32
      %v1722 = vpop.permute.xlu0 %1721
      %1723 = vrot.lane.b32.xlu0 %v1673, 32
      %v1724 = vpop.permute.xlu0 %1723
      %1725 = vrot.lane.b32.xlu0 %v1676, 32
      %v1726 = vpop.permute.xlu0 %1725
      %1727 = vrot.lane.b32.xlu0 %v1680, 32
      %v1728 = vpop.permute.xlu0 %1727
      %1729 = vrot.lane.b32.xlu0 %v1683, 32
      %v1730 = vpop.permute.xlu0 %1729
      %1731 = vrot.lane.b32.xlu0 %v1687, 32
      %v1732 = vpop.permute.xlu0 %1731
      %1733 = vrot.lane.b32.xlu0 %v1690, 32
      %v1734 = vpop.permute.xlu0 %1733
      %1735 = vrot.lane.b32.xlu0 %v1694, 32
      %v1736 = vpop.permute.xlu0 %1735
      %1737 = vrot.lane.b32.xlu0 %v1697, 32
      %v1738 = vpop.permute.xlu0 %1737
      %1739 = vrot.lane.b32.xlu0 %v1701, 32
      %v1740 = vpop.permute.xlu0 %1739
      %1741 = vrot.lane.b32.xlu0 %v1704, 32
      %v1742 = vpop.permute.xlu0 %1741
      %1743 = vrot.lane.b32.xlu0 %v1708, 32
      %v1744 = vpop.permute.xlu0 %1743
      %1745 = vrot.lane.b32.xlu0 %v1711, 32
      %v1746 = vpop.permute.xlu0 %1745
      %1747 = vrot.lane.b32.xlu0 %v1715, 32
      %v1748 = vpop.permute.xlu0 %1747
      %1749 = vrot.lane.b32.xlu0 %v1718, 32
      %v1750 = vpop.permute.xlu0 %1749
      %vm1767 = vcmask 290048
      %1768 = vst.msk [vmem:[#allocation2] sm:$0xf] %vm1767, %v1720
      %1769 = vst.msk [vmem:[#allocation2 + $0x4] sm:$0xf] %vm1767, %v1722
      %1770 = vst.msk [vmem:[#allocation2 + $0x8] sm:$0xf] %vm1767, %v1724
      %1771 = vst.msk [vmem:[#allocation2 + $0xc] sm:$0xf] %vm1767, %v1726
      %1772 = vst.msk [vmem:[#allocation2 + $0x10] sm:$0xf] %vm1767, %v1728
      %1773 = vst.msk [vmem:[#allocation2 + $0x14] sm:$0xf] %vm1767, %v1730
      %1774 = vst.msk [vmem:[#allocation2 + $0x18] sm:$0xf] %vm1767, %v1732
      %1775 = vst.msk [vmem:[#allocation2 + $0x1c] sm:$0xf] %vm1767, %v1734
      %1776 = vst.msk [vmem:[#allocation2 + $0x20] sm:$0xf] %vm1767, %v1736
      %1777 = vst.msk [vmem:[#allocation2 + $0x24] sm:$0xf] %vm1767, %v1738
      %1778 = vst.msk [vmem:[#allocation2 + $0x28] sm:$0xf] %vm1767, %v1740
      %1779 = vst.msk [vmem:[#allocation2 + $0x2c] sm:$0xf] %vm1767, %v1742
      %1780 = vst.msk [vmem:[#allocation2 + $0x30] sm:$0xf] %vm1767, %v1744
      %1781 = vst.msk [vmem:[#allocation2 + $0x34] sm:$0xf] %vm1767, %v1746
      %1782 = vst.msk [vmem:[#allocation2 + $0x38] sm:$0xf] %vm1767, %v1748
      %1783 = vst.msk [vmem:[#allocation2 + $0x3c] sm:$0xf] %vm1767, %v1750
      %v1784 = vld [vmem:[#allocation2] sm:$0xf]
      %v1785 = vld [vmem:[#allocation2 + $0x4] sm:$0xf]
      %v1786 = vld [vmem:[#allocation2 + $0x8] sm:$0xf]
      %v1787 = vld [vmem:[#allocation2 + $0xc] sm:$0xf]
      %v1788 = vld [vmem:[#allocation2 + $0x10] sm:$0xf]
      %v1789 = vld [vmem:[#allocation2 + $0x14] sm:$0xf]
      %v1790 = vld [vmem:[#allocation2 + $0x18] sm:$0xf]
      %v1791 = vld [vmem:[#allocation2 + $0x1c] sm:$0xf]
      %v1792 = vld [vmem:[#allocation2 + $0x20] sm:$0xf]
      %v1793 = vld [vmem:[#allocation2 + $0x24] sm:$0xf]
      %v1794 = vld [vmem:[#allocation2 + $0x28] sm:$0xf]
      %v1795 = vld [vmem:[#allocation2 + $0x2c] sm:$0xf]
      %v1796 = vld [vmem:[#allocation2 + $0x30] sm:$0xf]
      %v1797 = vld [vmem:[#allocation2 + $0x34] sm:$0xf]
      %v1798 = vld [vmem:[#allocation2 + $0x38] sm:$0xf]
      %v1799 = vld [vmem:[#allocation2 + $0x3c] sm:$0xf]
      %v1800 = vld [vmem:[%s1] sm:$0xf]
      %v1801 = vld [vmem:[%s1 + $0x4] sm:$0xf]
      %v1802 = vld [vmem:[%s1 + $0x8] sm:$0xf]
      %v1803 = vld [vmem:[%s1 + $0xc] sm:$0xf]
      %v1804 = vld [vmem:[%s1 + $0x10] sm:$0x3]
      %v1805 = vld [vmem:[%s2] sm:$0x1]
      %v1807 = vlaneseq
      %v1808 = vshrl.u32 %v1807, 7
      %v1809 = vsub.s32 0, %v1808
      %v1810 = vrot.slane %v1805, %v1809
      %v1828 = vunpack.c.l.b16 %v1784
      %v1829 = vunpack.c.l.b16 %v1785
      %v1830 = vunpack.c.l.b16 %v1786
      %v1831 = vunpack.c.l.b16 %v1787
      %v1832 = vunpack.c.l.b16 %v1788
      %v1833 = vunpack.c.l.b16 %v1789
      %v1834 = vunpack.c.l.b16 %v1790
      %v1835 = vunpack.c.l.b16 %v1791
      %v1836 = vunpack.c.l.b16 %v1792
      %v1837 = vunpack.c.l.b16 %v1793
      %v1838 = vunpack.c.l.b16 %v1794
      %v1839 = vunpack.c.l.b16 %v1795
      %v1840 = vunpack.c.l.b16 %v1796
      %v1841 = vunpack.c.l.b16 %v1797
      %v1842 = vunpack.c.l.b16 %v1798
      %v1843 = vunpack.c.l.b16 %v1799
      %v1844 = vpack.c.b16 %v1829, %v1828
      %v1845 = vpack.c.b16 %v1831, %v1830
      %v1846 = vpack.c.b16 %v1833, %v1832
      %v1847 = vpack.c.b16 %v1835, %v1834
      %v1848 = vpack.c.b16 %v1837, %v1836
      %v1849 = vpack.c.b16 %v1839, %v1838
      %v1850 = vpack.c.b16 %v1841, %v1840
      %v1851 = vpack.c.b16 %v1843, %v1842
      %v1857 = vunpack.c.l.b16 %v1800
      %v1858 = vunpack.c.l.b16 %v1801
      %v1859 = vunpack.c.l.b16 %v1802
      %v1860 = vunpack.c.l.b16 %v1803
      %v1861 = vunpack.c.l.b16 %v1804
      %v1862 = vpack.c.b16 %v1858, %v1857
      %v1863 = vpack.c.b16 %v1860, %v1859
      %v1864 = vpack.c.b16 %v1861, %v1861
      %vm1867 = vcmask 293888
      %v1869 = vsel %vm1867, %v1844, 0
      %v1872 = vsel %vm1867, %v1845, 0
      %v1875 = vsel %vm1867, %v1846, 0
      %v1878 = vsel %vm1867, %v1847, 0
      %v1881 = vsel %vm1867, %v1848, 0
      %v1884 = vsel %vm1867, %v1849, 0
      %v1887 = vsel %vm1867, %v1850, 0
      %v1890 = vsel %vm1867, %v1851, 0
      %vm1892 = vcmask 1041408
      %v1894 = vsel %vm1892, %v1864, 0
      %1896 = vmatprep.subr.bf16.mxu0 0
      %1897 = vmatpush1.bf16.msra.mxu0 0
      %1898 = vmatprep.subr.bf16.mxu0 0
      %1899 = vmatpush1.bf16.msra.mxu0 0
      %1900 = vmatprep.subr.bf16.mxu0 0
      %1901 = vmatpush1.bf16.msra.mxu0 0
      %1902 = vmatprep.subr.bf16.mxu0 0
      %1903 = vmatpush1.bf16.msra.mxu0 0
      %1904 = vmatprep.subr.bf16.mxu0 0
      %1905 = vmatpush1.bf16.msra.mxu0 0
      %1906 = vmatprep.subr.bf16.mxu0 0
      %1907 = vmatpush1.bf16.msra.mxu0 %v1894
      %1908 = vmatprep.subr.bf16.mxu0 0
      %1909 = vmatpush1.bf16.msra.mxu0 %v1863
      %1910 = vmatprep.subr.bf16.mxu0 0
      %1911 = vmatpush1.bf16.msra.mxu0 %v1862
      %1912 = vmatprep.subr.bf16.mxu0 0
      %1913 = vmatpush2.bf16.msra.mxu0 0
      %1914 = vmatprep.subr.bf16.mxu0 0
      %1915 = vmatpush2.bf16.msra.mxu0 0
      %1916 = vmatprep.subr.bf16.mxu0 0
      %1917 = vmatpush2.bf16.msra.mxu0 0
      %1918 = vmatprep.subr.bf16.mxu0 0
      %1919 = vmatpush2.bf16.msra.mxu0 0
      %1920 = vmatprep.subr.bf16.mxu0 0
      %1921 = vmatpush2.bf16.msra.mxu0 0
      %1922 = vmatprep.subr.bf16.mxu0 0
      %1923 = vmatpush2.bf16.msra.mxu0 0
      %1924 = vmatprep.subr.bf16.mxu0 0
      %1925 = vmatpush2.bf16.msra.mxu0 0
      %1926 = vmatprep.subr.bf16.mxu0 0
      %1927 = vmatpush2.bf16.msra.mxu0 0
      %1928 = vmatprep.mubr.bf16.mxu0 0
      %1929 = vmatmul.mubr.bf16.gmra.mxu0 %v1869
      %v1930 = vpop.f32.mrf.mxu0
      %v1931 = vadd.f32 %v1810, %v1930
      %v1932 = vpop.f32.mrf.mxu0
      %v1933 = vpop.f32.mrf.mxu0
      %v1934 = vadd.f32 %v1810, %v1933
      %v1935 = vpop.f32.mrf.mxu0
      %1936 = vmatprep.mubr.bf16.mxu0 0
      %1937 = vmatmul.mubr.bf16.gmra.mxu0 %v1872
      %v1938 = vpop.f32.mrf.mxu0
      %v1939 = vadd.f32 %v1810, %v1938
      %v1940 = vpop.f32.mrf.mxu0
      %v1941 = vpop.f32.mrf.mxu0
      %v1942 = vadd.f32 %v1810, %v1941
      %v1943 = vpop.f32.mrf.mxu0
      %1944 = vmatprep.mubr.bf16.mxu0 0
      %1945 = vmatmul.mubr.bf16.gmra.mxu0 %v1875
      %v1946 = vpop.f32.mrf.mxu0
      %v1947 = vadd.f32 %v1810, %v1946
      %v1948 = vpop.f32.mrf.mxu0
      %v1949 = vpop.f32.mrf.mxu0
      %v1950 = vadd.f32 %v1810, %v1949
      %v1951 = vpop.f32.mrf.mxu0
      %1952 = vmatprep.mubr.bf16.mxu0 0
      %1953 = vmatmul.mubr.bf16.gmra.mxu0 %v1878
      %v1954 = vpop.f32.mrf.mxu0
      %v1955 = vadd.f32 %v1810, %v1954
      %v1956 = vpop.f32.mrf.mxu0
      %v1957 = vpop.f32.mrf.mxu0
      %v1958 = vadd.f32 %v1810, %v1957
      %v1959 = vpop.f32.mrf.mxu0
      %1960 = vmatprep.mubr.bf16.mxu0 0
      %1961 = vmatmul.mubr.bf16.gmra.mxu0 %v1881
      %v1962 = vpop.f32.mrf.mxu0
      %v1963 = vadd.f32 %v1810, %v1962
      %v1964 = vpop.f32.mrf.mxu0
      %v1965 = vpop.f32.mrf.mxu0
      %v1966 = vadd.f32 %v1810, %v1965
      %v1967 = vpop.f32.mrf.mxu0
      %1968 = vmatprep.mubr.bf16.mxu0 0
      %1969 = vmatmul.mubr.bf16.gmra.mxu0 %v1884
      %v1970 = vpop.f32.mrf.mxu0
      %v1971 = vadd.f32 %v1810, %v1970
      %v1972 = vpop.f32.mrf.mxu0
      %v1973 = vpop.f32.mrf.mxu0
      %v1974 = vadd.f32 %v1810, %v1973
      %v1975 = vpop.f32.mrf.mxu0
      %1976 = vmatprep.mubr.bf16.mxu0 0
      %1977 = vmatmul.mubr.bf16.gmra.mxu0 %v1887
      %v1978 = vpop.f32.mrf.mxu0
      %v1979 = vadd.f32 %v1810, %v1978
      %v1980 = vpop.f32.mrf.mxu0
      %v1981 = vpop.f32.mrf.mxu0
      %v1982 = vadd.f32 %v1810, %v1981
      %v1983 = vpop.f32.mrf.mxu0
      %1984 = vmatprep.mubr.bf16.mxu0 0
      %1985 = vmatmul.mubr.bf16.gmra.mxu0 %v1890
      %v1986 = vpop.f32.mrf.mxu0
      %v1987 = vadd.f32 %v1810, %v1986
      %v1988 = vpop.f32.mrf.mxu0
      %v1989 = vpop.f32.mrf.mxu0
      %v1990 = vadd.f32 %v1810, %v1989
      %v1991 = vpop.f32.mrf.mxu0
      %1992 = vdwg.mxu0
      %vm1993 = vcmp.gt.f32.partialorder %v1931, 0.0
      %vm1994 = vcmp.gt.f32.partialorder %v1934, 0.0
      %vm1995 = vcmp.gt.f32.partialorder %v1939, 0.0
      %vm1996 = vcmp.gt.f32.partialorder %v1942, 0.0
      %vm1997 = vcmp.gt.f32.partialorder %v1947, 0.0
      %vm1998 = vcmp.gt.f32.partialorder %v1950, 0.0
      %vm1999 = vcmp.gt.f32.partialorder %v1955, 0.0
      %vm2000 = vcmp.gt.f32.partialorder %v1958, 0.0
      %vm2001 = vcmp.gt.f32.partialorder %v1963, 0.0
      %vm2002 = vcmp.gt.f32.partialorder %v1966, 0.0
      %vm2003 = vcmp.gt.f32.partialorder %v1971, 0.0
      %vm2004 = vcmp.gt.f32.partialorder %v1974, 0.0
      %vm2005 = vcmp.gt.f32.partialorder %v1979, 0.0
      %vm2006 = vcmp.gt.f32.partialorder %v1982, 0.0
      %vm2007 = vcmp.gt.f32.partialorder %v1987, 0.0
      %vm2008 = vcmp.gt.f32.partialorder %v1990, 0.0
      %v2009 = vld [vmem:[%s3] sm:$0x1]
      %v2011 = vlaneseq
      %v2012 = vshrl.u32 %v2011, 7
      %v2013 = vsub.s32 0, %v2012
      %v2014 = vrot.slane %v2009, %v2013
      %v2016 = vmul.f32 %v2014, %v1931
      %v2017 = vmul.f32 %v2014, %v1934
      %v2018 = vmul.f32 %v2014, %v1939
      %v2019 = vmul.f32 %v2014, %v1942
      %v2020 = vmul.f32 %v2014, %v1947
      %v2021 = vmul.f32 %v2014, %v1950
      %v2022 = vmul.f32 %v2014, %v1955
      %v2023 = vmul.f32 %v2014, %v1958
      %v2024 = vmul.f32 %v2014, %v1963
      %v2025 = vmul.f32 %v2014, %v1966
      %v2026 = vmul.f32 %v2014, %v1971
      %v2027 = vmul.f32 %v2014, %v1974
      %v2028 = vmul.f32 %v2014, %v1979
      %v2029 = vmul.f32 %v2014, %v1982
      %v2030 = vmul.f32 %v2014, %v1987
      %v2031 = vmul.f32 %v2014, %v1990
      %v2032 = vsel %vm1993, %v1931, %v2016
      %v2033 = vsel %vm1994, %v1934, %v2017
      %v2034 = vsel %vm1995, %v1939, %v2018
      %v2035 = vsel %vm1996, %v1942, %v2019
      %v2036 = vsel %vm1997, %v1947, %v2020
      %v2037 = vsel %vm1998, %v1950, %v2021
      %v2038 = vsel %vm1999, %v1955, %v2022
      %v2039 = vsel %vm2000, %v1958, %v2023
      %v2040 = vsel %vm2001, %v1963, %v2024
      %v2041 = vsel %vm2002, %v1966, %v2025
      %v2042 = vsel %vm2003, %v1971, %v2026
      %v2043 = vsel %vm2004, %v1974, %v2027
      %v2044 = vsel %vm2005, %v1979, %v2028
      %v2045 = vsel %vm2006, %v1982, %v2029
      %v2046 = vsel %vm2007, %v1987, %v2030
      %v2047 = vsel %vm2008, %v1990, %v2031
      %v2048 = vpack.c.bf16 %v2033, %v2032
      %v2049 = vpack.c.bf16 %v2035, %v2034
      %v2050 = vpack.c.bf16 %v2037, %v2036
      %v2051 = vpack.c.bf16 %v2039, %v2038
      %v2052 = vpack.c.bf16 %v2041, %v2040
      %v2053 = vpack.c.bf16 %v2043, %v2042
      %v2054 = vpack.c.bf16 %v2045, %v2044
      %v2055 = vpack.c.bf16 %v2047, %v2046
      %v2064 = vunpack.c.l.b16 %v2048
      %v2065 = vunpack.c.h.b16 %v2048
      %v2066 = vunpack.c.l.b16 %v2049
      %v2067 = vunpack.c.h.b16 %v2049
      %v2068 = vunpack.c.l.b16 %v2050
      %v2069 = vunpack.c.h.b16 %v2050
      %v2070 = vunpack.c.l.b16 %v2051
      %v2071 = vunpack.c.h.b16 %v2051
      %v2072 = vunpack.c.l.b16 %v2052
      %v2073 = vunpack.c.h.b16 %v2052
      %v2074 = vunpack.c.l.b16 %v2053
      %v2075 = vunpack.c.h.b16 %v2053
      %v2076 = vunpack.c.l.b16 %v2054
      %v2077 = vunpack.c.h.b16 %v2054
      %v2078 = vunpack.c.l.b16 %v2055
      %v2079 = vunpack.c.h.b16 %v2055
      %v2080 = vpack.c.b16 %v2064, %v2064
      %v2081 = vpack.c.b16 %v2065, %v2065
      %v2082 = vpack.c.b16 %v2066, %v2066
      %v2083 = vpack.c.b16 %v2067, %v2067
      %v2084 = vpack.c.b16 %v2068, %v2068
      %v2085 = vpack.c.b16 %v2069, %v2069
      %v2086 = vpack.c.b16 %v2070, %v2070
      %v2087 = vpack.c.b16 %v2071, %v2071
      %v2088 = vpack.c.b16 %v2072, %v2072
      %v2089 = vpack.c.b16 %v2073, %v2073
      %v2090 = vpack.c.b16 %v2074, %v2074
      %v2091 = vpack.c.b16 %v2075, %v2075
      %v2092 = vpack.c.b16 %v2076, %v2076
      %v2093 = vpack.c.b16 %v2077, %v2077
      %v2094 = vpack.c.b16 %v2078, %v2078
      %v2095 = vpack.c.b16 %v2079, %v2079
      %vm2112 = vcmask 125952
      %2113 = vst.msk [vmem:[%s197] sm:$0xf] %vm2112, %v2080
      %2114 = vst.msk [vmem:[%s197 + $0x4] sm:$0xf] %vm2112, %v2081
      %2115 = vst.msk [vmem:[%s197 + $0x8] sm:$0xf] %vm2112, %v2082
      %2116 = vst.msk [vmem:[%s197 + $0xc] sm:$0xf] %vm2112, %v2083
      %2117 = vst.msk [vmem:[%s197 + $0x10] sm:$0xf] %vm2112, %v2084
      %2118 = vst.msk [vmem:[%s197 + $0x14] sm:$0xf] %vm2112, %v2085
      %2119 = vst.msk [vmem:[%s197 + $0x18] sm:$0xf] %vm2112, %v2086
      %2120 = vst.msk [vmem:[%s197 + $0x1c] sm:$0xf] %vm2112, %v2087
      %2121 = vst.msk [vmem:[%s197 + $0x20] sm:$0xf] %vm2112, %v2088
      %2122 = vst.msk [vmem:[%s197 + $0x24] sm:$0xf] %vm2112, %v2089
      %2123 = vst.msk [vmem:[%s197 + $0x28] sm:$0xf] %vm2112, %v2090
      %2124 = vst.msk [vmem:[%s197 + $0x2c] sm:$0xf] %vm2112, %v2091
      %2125 = vst.msk [vmem:[%s197 + $0x30] sm:$0xf] %vm2112, %v2092
      %2126 = vst.msk [vmem:[%s197 + $0x34] sm:$0xf] %vm2112, %v2093
      %2127 = vst.msk [vmem:[%s197 + $0x38] sm:$0xf] %vm2112, %v2094
      %2128 = vst.msk [vmem:[%s197 + $0x3c] sm:$0xf] %vm2112, %v2095
      %p2129 = scmp.lt.s32.totalorder %s15, 3
      %s2130 = scalar_select %p2129, %s15, 3
      %s2131 = smul.addr %s2130, 16
      %s2132 = smul.addr %s2131, 4
      %s2133 = scalar_lea.vmem %s4, %s2132
      // Predicated region
      $region37: #{upsample_block.1} parent=35 // pred_check
        %p2134 = pneg %p122
      $region38: #{upsample_block.1} parent=35 // pred_check_branch
        %2136 = sbr.rel (%p2134) target = $region40
      $region39: #{upsample_block.1} parent=35 // pred_region
        _
      $region40: #{upsample_block.1} parent=35 // pred_fallthru
        _
    $region36: #{upsample_block.1} parent=5 // pred_fallthru
      _
    %p2137 = scmp.le.s32.totalorder 2, %s10
    // Predicated region
    $region41: #{upsample_block.1} parent=5 // pred_check
      %p2138 = pneg %p2137
    $region42: #{upsample_block.1} parent=5 // pred_check_branch
      %2140 = sbr.rel (%p2138) target = $region44
    $region43: #{upsample_block.1} parent=5 // pred_region
      %s2141 = ssub.s32 %s10, 2
      // Predicated region
      $region45: #{upsample_block.1} parent=43 // pred_check
        %p2142 = pneg %p128
      $region46: #{upsample_block.1} parent=43 // pred_check_branch
        %2144 = sbr.rel (%p2142) target = $region48
      $region47: #{upsample_block.1} parent=43 // pred_region
        %p2145 = scmp.lt.s32.totalorder %s16, 3
        %s2146 = scalar_select %p2145, %s16, 3
        %s2147 = smul.addr %s2146, 16
        %s2148 = smul.addr %s2147, 4
        %s2149 = scalar_lea.vmem %s4, %s2148
      $region48: #{upsample_block.1} parent=43 // pred_fallthru
        _
    $region44: #{upsample_block.1} parent=5 // pred_fallthru
      _
  $region6: #{upsample_block.1} parent=0 // loop_footer
    %s14 = sadd.s32 1, %s10
  $region7: #{upsample_block.1} parent=0 // loop_footer_branch
    %9 = sbr.rel target = $region3
  $region8: #{upsample_block.1} parent=0 // loop_exit
    _

</llo_original>
